<compile_context>
chip_gen: v5e
topology: v5e:2x2
jax: 0.10.0
libtpu: 0.0.40
codegen_flags: <defaults>
</compile_context>

<pallas_src>
import jax
import jax.numpy as jnp
from jax import lax
from jax.experimental import pallas as pl
from jax.experimental.pallas import tpu as pltpu


# ------------------------- banded weight packing ------------------------------

def _banded_weights(w_oidhw, width):
    """PyTorch (Cout, Cin, 3, 3, 3) weights -> (9, W*Cin, W*Cout) banded.

    B[kd*3+kh, wi*Cin+ci, wo*Cout+co] = W[co, ci, kd, kh, wi-wo+1]
                                        if wi-wo+1 in {0,1,2} else 0
    so (frame_row @ B[tap]) performs the kw-tap sum and the Cin contraction for
    every output w position in one matmul; the 'same'-padding boundary along w
    is handled by the zeroed out-of-band entries (no data padding along w).
    """
    cout, cin = w_oidhw.shape[:2]
    wt = jnp.transpose(w_oidhw, (2, 3, 4, 1, 0)).reshape(9, 3, cin, cout)
    wi = jnp.arange(width)[:, None]            # input w position
    wo = jnp.arange(width)[None, :]            # output w position
    kw = wi - wo + 1                           # kw tap index
    mask = (kw >= 0) & (kw <= 2)
    band = wt[:, jnp.clip(kw, 0, 2)]           # (9, W, W, Cin, Cout)
    band = jnp.where(mask[None, :, :, None, None], band, 0.0)
    band = jnp.transpose(band, (0, 1, 3, 2, 4))  # (9, W, Cin, W, Cout)
    return band.reshape(9, width * cin, width * cout)


# ------------------------- fused UNetConvBlock kernel -------------------------

def unet_conv_block_pallas(x_ncdhw, w1, b1, w2, b2):
    """Conv3d(3x3x3, padding=1) + ReLU, twice, fused into one Pallas call."""
    n, cin, d, h, w = x_ncdhw.shape
    cmid = w1.shape[0]
    cout = w2.shape[0]
    assert w1.shape == (cmid, cin, 3, 3, 3) and w2.shape == (cout, cmid, 3, 3, 3)

    hp = h + 2                    # padded-h pitch of the frame
    m = d * hp                    # matmul M dim (includes 2*d junk rows)
    frame = (d + 2) * hp + 2      # +2 so the last tap's slice stays in bounds
    l_in1, l_mid, l_out = w * cin, w * cmid, w * cout

    # ---- host-side prep: one fused XLA pass over the (small) input ----------
    x = jnp.transpose(x_ncdhw, (0, 2, 3, 4, 1)).astype(jnp.float32)
    x = x.reshape(n, d, h, l_in1)
    x = jnp.pad(x, ((0, 0), (1, 1), (1, 1), (0, 0)))           # d/h zero halo
    x2 = jnp.pad(x.reshape(n, (d + 2) * hp, l_in1), ((0, 0), (0, 2), (0, 0)))

    w1b = _banded_weights(w1, w).astype(jnp.bfloat16)          # (9, l_in1, l_mid)
    w2b = _banded_weights(w2, w).astype(jnp.bfloat16)          # (9, l_mid, l_out)
    b1r = jnp.tile(b1.astype(jnp.float32), w).reshape(1, l_mid)
    b2r = jnp.tile(b2.astype(jnp.float32), w).reshape(1, l_out)
    # frame rows of the conv1 output whose h index is a real output row
    row_mask = (jnp.arange(m) % hp < h).astype(jnp.float32).reshape(m, 1)

    def kernel(x_ref, w1_ref, b1_ref, w2_ref, b2_ref, mask_ref, o_ref, q_ref):
        def conv9(src_ref, w_ref):
            acc = jnp.zeros((m, w_ref.shape[-1]), jnp.float32)
            for kd in range(3):                 # 9 banded taps, unrolled
                for kh in range(3):
                    off = kd * hp + kh          # static, contiguous row window
                    lhs = src_ref[off:off + m, :].astype(jnp.bfloat16)
                    acc = acc + jnp.dot(lhs, w_ref[kd * 3 + kh],
                                        preferred_element_type=jnp.float32)
            return acc

        # conv1 + bias + ReLU; junk rows (which would land on the halo rows of
        # the intermediate frame) are zeroed with the precomputed row mask.
        y = jnp.maximum(conv9(x_ref, w1_ref) + b1_ref[...], 0.0) * mask_ref[...]
        # place into the zero-haloed intermediate frame held in VMEM
        q_ref[...] = jnp.zeros((frame, l_mid), jnp.float32)
        q_ref[hp + 1:hp + 1 + m, :] = y
        # conv2 + bias + ReLU (its junk rows are dropped on the host side)
        o_ref[...] = jnp.maximum(conv9(q_ref, w2_ref) + b2_ref[...],
                                 0.0).astype(o_ref.dtype)

    out = pl.pallas_call(
        kernel,
        out_shape=jax.ShapeDtypeStruct((n, m, l_out), jnp.float32),
        grid_spec=pltpu.PrefetchScalarGridSpec(
            num_scalar_prefetch=0,
            grid=(n,),
            in_specs=[
                pl.BlockSpec((None, frame, l_in1), lambda ni: (ni, 0, 0)),
                # constant index maps -> weights / bias / mask stay resident
                pl.BlockSpec((9, l_in1, l_mid), lambda ni: (0, 0, 0)),
                pl.BlockSpec((1, l_mid), lambda ni: (0, 0)),
                pl.BlockSpec((9, l_mid, l_out), lambda ni: (0, 0, 0)),
                pl.BlockSpec((1, l_out), lambda ni: (0, 0)),
                pl.BlockSpec((m, 1), lambda ni: (0, 0)),
            ],
            out_specs=pl.BlockSpec((None, m, l_out), lambda ni: (ni, 0, 0)),
            scratch_shapes=[pltpu.VMEM((frame, l_mid), jnp.float32)],
        ),
        compiler_params=pltpu.CompilerParams(
            dimension_semantics=("parallel",)),
    )(x2, w1b, b1r, w2b, b2r, row_mask)

    # drop the per-depth junk rows (h in {H, H+1}) and go back to NCDHW; XLA
    # fuses this slice with the unavoidable layout transpose.
    out = out.reshape(n, d, hp, w, cout)[:, :, :h]
    return jnp.transpose(out, (0, 4, 1, 2, 3))


# ------------------------- UNetConvBlock ---------------------------------------

class UNetConvBlockPallas:
    def __init__(self, in_size, out_size, padding, batch_norm,
                 batch_norm_switchable, kernel_size, key):
        assert kernel_size == 3 and int(padding) == 1, \
            "this Pallas implementation covers the kernel_size=3, padding=1 config"
        assert not batch_norm and not batch_norm_switchable, \
            "BatchNorm3d / SwitchNorm3d branches are not implemented"
        self.padding = int(padding)
        k1, k2, k3, k4 = jax.random.split(key, 4)
        bound1 = 1.0 / (in_size * kernel_size ** 3) ** 0.5
        bound2 = 1.0 / (out_size * kernel_size ** 3) ** 0.5
        # PyTorch Conv3d weight layout: (Cout, Cin, kD, kH, kW)
        self.w1 = jax.random.uniform(
            k1, (out_size, in_size, kernel_size, kernel_size, kernel_size),
            jnp.float32, -bound1, bound1)
        self.b1 = jax.random.uniform(k2, (out_size,), jnp.float32, -bound1, bound1)
        self.w2 = jax.random.uniform(
            k3, (out_size, out_size, kernel_size, kernel_size, kernel_size),
            jnp.float32, -bound2, bound2)
        self.b2 = jax.random.uniform(k4, (out_size,), jnp.float32, -bound2, bound2)

    def __call__(self, x_ncdhw):
        return unet_conv_block_pallas(x_ncdhw, self.w1, self.b1, self.w2, self.b2)


# ------------------------- reference (plain JAX, f32) --------------------------

def _ref_conv3d_relu(x_ncdhw, w, b, padding):
    dn = lax.conv_dimension_numbers(x_ncdhw.shape, w.shape,
                                    ('NCDHW', 'OIDHW', 'NCDHW'))
    y = lax.conv_general_dilated(
        x_ncdhw, w, window_strides=(1, 1, 1),
        padding=[(padding, padding)] * 3, dimension_numbers=dn,
        precision=lax.Precision.HIGHEST)
    return jnp.maximum(y + b.reshape(1, -1, 1, 1, 1), 0.0)


def reference_forward(x, block):
    y = _ref_conv3d_relu(x, block.w1, block.b1, block.padding)
    return _ref_conv3d_relu(y, block.w2, block.b2, block.padding)


# ------------------------- main -------------------------------------------------

if __name__ == "__main__":
    key = jax.random.PRNGKey(0)
    k_x, k_p = jax.random.split(key)

    in_size, out_size, kernel_size, padding = 4, 8, 3, True
    # NCDHW input: (N, Cin, D, H, W); W * out_size = 128 -> lane-dense outputs
    x = jax.random.normal(k_x, (2, in_size, 8, 8, 16), jnp.float32)

    block = UNetConvBlockPallas(in_size, out_size, padding,
                                batch_norm=False, batch_norm_switchable=False,
                                kernel_size=kernel_size, key=k_p)

    out = jax.block_until_ready(jax.jit(block.__call__)(x))
    ref = jax.block_until_ready(reference_forward(x, block))

    assert out.shape == ref.shape, (out.shape, ref.shape)
    # bf16 MXU operands with f32 accumulation -> ~1e-3-level deviation from the
    # exact f32 reference; a structural bug would be O(1).
    if not jnp.allclose(out.astype(jnp.float32), ref, rtol=3e-2, atol=3e-2):
        err = float(jnp.max(jnp.abs(out.astype(jnp.float32) - ref)))
        raise AssertionError(
            f"Pallas UNetConvBlock output does not match reference "
            f"(max abs err = {err})")

    print("KERNEL_OK")
</pallas_src>

<mosaic_0001>
module attributes {stable_mosaic.version = 11 : i64} {
  func.func @kernel(%arg0: i32, %arg1: memref<1x102x64xf32, #tpu.memory_space<vmem>>, %arg2: memref<9x64x128xbf16, #tpu.memory_space<vmem>>, %arg3: memref<1x128xf32, #tpu.memory_space<vmem>>, %arg4: memref<9x128x128xbf16, #tpu.memory_space<vmem>>, %arg5: memref<1x128xf32, #tpu.memory_space<vmem>>, %arg6: memref<80x1xf32, #tpu.memory_space<vmem>>, %arg7: memref<1x80x128xf32, #tpu.memory_space<vmem>>, %arg8: memref<102x128xf32, #tpu.memory_space<vmem>>) attributes {dimension_semantics = [#tpu.dimension_semantics<parallel>], iteration_bounds = array<i64: 2>, scalar_prefetch = 0 : i64, scratch_operands = 1 : i64, tpu.core_type = #tpu.core_type<tc>, window_params = [{transform_indices = @transform_0, window_bounds = array<i64: 1, 102, 64>}, {pipeline_mode = #tpu.pipeline_mode<synchronous>, transform_indices = @transform_1, window_bounds = array<i64: 9, 64, 128>}, {pipeline_mode = #tpu.pipeline_mode<synchronous>, transform_indices = @transform_2, window_bounds = array<i64: 1, 128>}, {pipeline_mode = #tpu.pipeline_mode<synchronous>, transform_indices = @transform_3, window_bounds = array<i64: 9, 128, 128>}, {pipeline_mode = #tpu.pipeline_mode<synchronous>, transform_indices = @transform_4, window_bounds = array<i64: 1, 128>}, {pipeline_mode = #tpu.pipeline_mode<synchronous>, transform_indices = @transform_5, window_bounds = array<i64: 80, 1>}, {transform_indices = @transform_6, window_bounds = array<i64: 1, 80, 128>}]} {
    %cst = arith.constant 0.000000e+00 : f32
    %0 = vector.broadcast %cst : f32 to vector<80x128xf32>
    %c0 = arith.constant 0 : index
    %c0_0 = arith.constant 0 : index
    %c0_1 = arith.constant 0 : index
    %1 = vector.load %arg1[%c0, %c0_0, %c0_1] : memref<1x102x64xf32, #tpu.memory_space<vmem>>, vector<1x80x64xf32>
    %2 = vector.shape_cast %1 : vector<1x80x64xf32> to vector<80x64xf32>
    %3 = arith.truncf %2 : vector<80x64xf32> to vector<80x64xbf16>
    %c0_2 = arith.constant 0 : index
    %c0_3 = arith.constant 0 : index
    %c0_4 = arith.constant 0 : index
    %4 = vector.load %arg2[%c0_2, %c0_3, %c0_4] : memref<9x64x128xbf16, #tpu.memory_space<vmem>>, vector<1x64x128xbf16>
    %5 = vector.shape_cast %4 : vector<1x64x128xbf16> to vector<64x128xbf16>
    %cst_5 = arith.constant dense<0.000000e+00> : vector<80x128xf32>
    %6 = tpu.matmul %3, %5, %cst_5 {dimension_numbers = #tpu.dot_dimension_numbers<[1], [0], [0], [1], [0, 0, 1, 1], [], []>} : vector<80x64xbf16>, vector<64x128xbf16>, vector<80x128xf32> -> vector<80x128xf32>
    %7 = arith.addf %0, %6 : vector<80x128xf32>
    %c0_6 = arith.constant 0 : index
    %c1 = arith.constant 1 : index
    %c0_7 = arith.constant 0 : index
    %8 = vector.load %arg1[%c0_6, %c1, %c0_7] : memref<1x102x64xf32, #tpu.memory_space<vmem>>, vector<1x80x64xf32>
    %9 = vector.shape_cast %8 : vector<1x80x64xf32> to vector<80x64xf32>
    %10 = arith.truncf %9 : vector<80x64xf32> to vector<80x64xbf16>
    %c1_8 = arith.constant 1 : index
    %c0_9 = arith.constant 0 : index
    %c0_10 = arith.constant 0 : index
    %11 = vector.load %arg2[%c1_8, %c0_9, %c0_10] : memref<9x64x128xbf16, #tpu.memory_space<vmem>>, vector<1x64x128xbf16>
    %12 = vector.shape_cast %11 : vector<1x64x128xbf16> to vector<64x128xbf16>
    %cst_11 = arith.constant dense<0.000000e+00> : vector<80x128xf32>
    %13 = tpu.matmul %10, %12, %cst_11 {dimension_numbers = #tpu.dot_dimension_numbers<[1], [0], [0], [1], [0, 0, 1, 1], [], []>} : vector<80x64xbf16>, vector<64x128xbf16>, vector<80x128xf32> -> vector<80x128xf32>
    %14 = arith.addf %7, %13 : vector<80x128xf32>
    %c0_12 = arith.constant 0 : index
    %c2 = arith.constant 2 : index
    %c0_13 = arith.constant 0 : index
    %15 = vector.load %arg1[%c0_12, %c2, %c0_13] : memref<1x102x64xf32, #tpu.memory_space<vmem>>, vector<1x80x64xf32>
    %16 = vector.shape_cast %15 : vector<1x80x64xf32> to vector<80x64xf32>
    %17 = arith.truncf %16 : vector<80x64xf32> to vector<80x64xbf16>
    %c2_14 = arith.constant 2 : index
    %c0_15 = arith.constant 0 : index
    %c0_16 = arith.constant 0 : index
    %18 = vector.load %arg2[%c2_14, %c0_15, %c0_16] : memref<9x64x128xbf16, #tpu.memory_space<vmem>>, vector<1x64x128xbf16>
    %19 = vector.shape_cast %18 : vector<1x64x128xbf16> to vector<64x128xbf16>
    %cst_17 = arith.constant dense<0.000000e+00> : vector<80x128xf32>
    %20 = tpu.matmul %17, %19, %cst_17 {dimension_numbers = #tpu.dot_dimension_numbers<[1], [0], [0], [1], [0, 0, 1, 1], [], []>} : vector<80x64xbf16>, vector<64x128xbf16>, vector<80x128xf32> -> vector<80x128xf32>
    %21 = arith.addf %14, %20 : vector<80x128xf32>
    %c0_18 = arith.constant 0 : index
    %c10 = arith.constant 10 : index
    %c0_19 = arith.constant 0 : index
    %22 = vector.load %arg1[%c0_18, %c10, %c0_19] : memref<1x102x64xf32, #tpu.memory_space<vmem>>, vector<1x80x64xf32>
    %23 = vector.shape_cast %22 : vector<1x80x64xf32> to vector<80x64xf32>
    %24 = arith.truncf %23 : vector<80x64xf32> to vector<80x64xbf16>
    %c3 = arith.constant 3 : index
    %c0_20 = arith.constant 0 : index
    %c0_21 = arith.constant 0 : index
    %25 = vector.load %arg2[%c3, %c0_20, %c0_21] : memref<9x64x128xbf16, #tpu.memory_space<vmem>>, vector<1x64x128xbf16>
    %26 = vector.shape_cast %25 : vector<1x64x128xbf16> to vector<64x128xbf16>
    %cst_22 = arith.constant dense<0.000000e+00> : vector<80x128xf32>
    %27 = tpu.matmul %24, %26, %cst_22 {dimension_numbers = #tpu.dot_dimension_numbers<[1], [0], [0], [1], [0, 0, 1, 1], [], []>} : vector<80x64xbf16>, vector<64x128xbf16>, vector<80x128xf32> -> vector<80x128xf32>
    %28 = arith.addf %21, %27 : vector<80x128xf32>
    %c0_23 = arith.constant 0 : index
    %c11 = arith.constant 11 : index
    %c0_24 = arith.constant 0 : index
    %29 = vector.load %arg1[%c0_23, %c11, %c0_24] : memref<1x102x64xf32, #tpu.memory_space<vmem>>, vector<1x80x64xf32>
    %30 = vector.shape_cast %29 : vector<1x80x64xf32> to vector<80x64xf32>
    %31 = arith.truncf %30 : vector<80x64xf32> to vector<80x64xbf16>
    %c4 = arith.constant 4 : index
    %c0_25 = arith.constant 0 : index
    %c0_26 = arith.constant 0 : index
    %32 = vector.load %arg2[%c4, %c0_25, %c0_26] : memref<9x64x128xbf16, #tpu.memory_space<vmem>>, vector<1x64x128xbf16>
    %33 = vector.shape_cast %32 : vector<1x64x128xbf16> to vector<64x128xbf16>
    %cst_27 = arith.constant dense<0.000000e+00> : vector<80x128xf32>
    %34 = tpu.matmul %31, %33, %cst_27 {dimension_numbers = #tpu.dot_dimension_numbers<[1], [0], [0], [1], [0, 0, 1, 1], [], []>} : vector<80x64xbf16>, vector<64x128xbf16>, vector<80x128xf32> -> vector<80x128xf32>
    %35 = arith.addf %28, %34 : vector<80x128xf32>
    %c0_28 = arith.constant 0 : index
    %c12 = arith.constant 12 : index
    %c0_29 = arith.constant 0 : index
    %36 = vector.load %arg1[%c0_28, %c12, %c0_29] : memref<1x102x64xf32, #tpu.memory_space<vmem>>, vector<1x80x64xf32>
    %37 = vector.shape_cast %36 : vector<1x80x64xf32> to vector<80x64xf32>
    %38 = arith.truncf %37 : vector<80x64xf32> to vector<80x64xbf16>
    %c5 = arith.constant 5 : index
    %c0_30 = arith.constant 0 : index
    %c0_31 = arith.constant 0 : index
    %39 = vector.load %arg2[%c5, %c0_30, %c0_31] : memref<9x64x128xbf16, #tpu.memory_space<vmem>>, vector<1x64x128xbf16>
    %40 = vector.shape_cast %39 : vector<1x64x128xbf16> to vector<64x128xbf16>
    %cst_32 = arith.constant dense<0.000000e+00> : vector<80x128xf32>
    %41 = tpu.matmul %38, %40, %cst_32 {dimension_numbers = #tpu.dot_dimension_numbers<[1], [0], [0], [1], [0, 0, 1, 1], [], []>} : vector<80x64xbf16>, vector<64x128xbf16>, vector<80x128xf32> -> vector<80x128xf32>
    %42 = arith.addf %35, %41 : vector<80x128xf32>
    %c0_33 = arith.constant 0 : index
    %c20 = arith.constant 20 : index
    %c0_34 = arith.constant 0 : index
    %43 = vector.load %arg1[%c0_33, %c20, %c0_34] : memref<1x102x64xf32, #tpu.memory_space<vmem>>, vector<1x80x64xf32>
    %44 = vector.shape_cast %43 : vector<1x80x64xf32> to vector<80x64xf32>
    %45 = arith.truncf %44 : vector<80x64xf32> to vector<80x64xbf16>
    %c6 = arith.constant 6 : index
    %c0_35 = arith.constant 0 : index
    %c0_36 = arith.constant 0 : index
    %46 = vector.load %arg2[%c6, %c0_35, %c0_36] : memref<9x64x128xbf16, #tpu.memory_space<vmem>>, vector<1x64x128xbf16>
    %47 = vector.shape_cast %46 : vector<1x64x128xbf16> to vector<64x128xbf16>
    %cst_37 = arith.constant dense<0.000000e+00> : vector<80x128xf32>
    %48 = tpu.matmul %45, %47, %cst_37 {dimension_numbers = #tpu.dot_dimension_numbers<[1], [0], [0], [1], [0, 0, 1, 1], [], []>} : vector<80x64xbf16>, vector<64x128xbf16>, vector<80x128xf32> -> vector<80x128xf32>
    %49 = arith.addf %42, %48 : vector<80x128xf32>
    %c0_38 = arith.constant 0 : index
    %c21 = arith.constant 21 : index
    %c0_39 = arith.constant 0 : index
    %50 = vector.load %arg1[%c0_38, %c21, %c0_39] : memref<1x102x64xf32, #tpu.memory_space<vmem>>, vector<1x80x64xf32>
    %51 = vector.shape_cast %50 : vector<1x80x64xf32> to vector<80x64xf32>
    %52 = arith.truncf %51 : vector<80x64xf32> to vector<80x64xbf16>
    %c7 = arith.constant 7 : index
    %c0_40 = arith.constant 0 : index
    %c0_41 = arith.constant 0 : index
    %53 = vector.load %arg2[%c7, %c0_40, %c0_41] : memref<9x64x128xbf16, #tpu.memory_space<vmem>>, vector<1x64x128xbf16>
    %54 = vector.shape_cast %53 : vector<1x64x128xbf16> to vector<64x128xbf16>
    %cst_42 = arith.constant dense<0.000000e+00> : vector<80x128xf32>
    %55 = tpu.matmul %52, %54, %cst_42 {dimension_numbers = #tpu.dot_dimension_numbers<[1], [0], [0], [1], [0, 0, 1, 1], [], []>} : vector<80x64xbf16>, vector<64x128xbf16>, vector<80x128xf32> -> vector<80x128xf32>
    %56 = arith.addf %49, %55 : vector<80x128xf32>
    %c0_43 = arith.constant 0 : index
    %c22 = arith.constant 22 : index
    %c0_44 = arith.constant 0 : index
    %57 = vector.load %arg1[%c0_43, %c22, %c0_44] : memref<1x102x64xf32, #tpu.memory_space<vmem>>, vector<1x80x64xf32>
    %58 = vector.shape_cast %57 : vector<1x80x64xf32> to vector<80x64xf32>
    %59 = arith.truncf %58 : vector<80x64xf32> to vector<80x64xbf16>
    %c8 = arith.constant 8 : index
    %c0_45 = arith.constant 0 : index
    %c0_46 = arith.constant 0 : index
    %60 = vector.load %arg2[%c8, %c0_45, %c0_46] : memref<9x64x128xbf16, #tpu.memory_space<vmem>>, vector<1x64x128xbf16>
    %61 = vector.shape_cast %60 : vector<1x64x128xbf16> to vector<64x128xbf16>
    %cst_47 = arith.constant dense<0.000000e+00> : vector<80x128xf32>
    %62 = tpu.matmul %59, %61, %cst_47 {dimension_numbers = #tpu.dot_dimension_numbers<[1], [0], [0], [1], [0, 0, 1, 1], [], []>} : vector<80x64xbf16>, vector<64x128xbf16>, vector<80x128xf32> -> vector<80x128xf32>
    %63 = arith.addf %56, %62 : vector<80x128xf32>
    %c0_48 = arith.constant 0 : index
    %c0_49 = arith.constant 0 : index
    %64 = vector.load %arg3[%c0_48, %c0_49] : memref<1x128xf32, #tpu.memory_space<vmem>>, vector<1x128xf32>
    %65 = vector.broadcast %64 : vector<1x128xf32> to vector<80x128xf32>
    %66 = arith.addf %63, %65 : vector<80x128xf32>
    %cst_50 = arith.constant 0.000000e+00 : f32
    %67 = vector.broadcast %cst_50 : f32 to vector<80x128xf32>
    %68 = arith.maximumf %66, %67 : vector<80x128xf32>
    %c0_51 = arith.constant 0 : index
    %c0_52 = arith.constant 0 : index
    %69 = vector.load %arg6[%c0_51, %c0_52] : memref<80x1xf32, #tpu.memory_space<vmem>>, vector<80x1xf32>
    %70 = vector.broadcast %69 : vector<80x1xf32> to vector<80x128xf32>
    %71 = arith.mulf %68, %70 : vector<80x128xf32>
    %cst_53 = arith.constant 0.000000e+00 : f32
    %72 = vector.broadcast %cst_53 : f32 to vector<102x128xf32>
    %c0_54 = arith.constant 0 : index
    %c0_55 = arith.constant 0 : index
    %73 = vector.load %arg8[%c0_54, %c0_55] : memref<102x128xf32, #tpu.memory_space<vmem>>, vector<102x128xf32>
    tpu.vector_store %arg8[%c0_54, %c0_55], %72 {strides = array<i32>} : memref<102x128xf32, #tpu.memory_space<vmem>>, vector<102x128xf32>,
    %c11_56 = arith.constant 11 : index
    %c0_57 = arith.constant 0 : index
    %74 = vector.load %arg8[%c11_56, %c0_57] : memref<102x128xf32, #tpu.memory_space<vmem>>, vector<80x128xf32>
    tpu.vector_store %arg8[%c11_56, %c0_57], %71 {strides = array<i32>} : memref<102x128xf32, #tpu.memory_space<vmem>>, vector<80x128xf32>,
    %cst_58 = arith.constant 0.000000e+00 : f32
    %75 = vector.broadcast %cst_58 : f32 to vector<80x128xf32>
    %c0_59 = arith.constant 0 : index
    %c0_60 = arith.constant 0 : index
    %76 = vector.load %arg8[%c0_59, %c0_60] : memref<102x128xf32, #tpu.memory_space<vmem>>, vector<80x128xf32>
    %77 = arith.truncf %76 : vector<80x128xf32> to vector<80x128xbf16>
    %c0_61 = arith.constant 0 : index
    %c0_62 = arith.constant 0 : index
    %c0_63 = arith.constant 0 : index
    %78 = vector.load %arg4[%c0_61, %c0_62, %c0_63] : memref<9x128x128xbf16, #tpu.memory_space<vmem>>, vector<1x128x128xbf16>
    %79 = vector.shape_cast %78 : vector<1x128x128xbf16> to vector<128x128xbf16>
    %cst_64 = arith.constant dense<0.000000e+00> : vector<80x128xf32>
    %80 = tpu.matmul %77, %79, %cst_64 {dimension_numbers = #tpu.dot_dimension_numbers<[1], [0], [0], [1], [0, 0, 1, 1], [], []>} : vector<80x128xbf16>, vector<128x128xbf16>, vector<80x128xf32> -> vector<80x128xf32>
    %81 = arith.addf %75, %80 : vector<80x128xf32>
    %c1_65 = arith.constant 1 : index
    %c0_66 = arith.constant 0 : index
    %82 = vector.load %arg8[%c1_65, %c0_66] : memref<102x128xf32, #tpu.memory_space<vmem>>, vector<80x128xf32>
    %83 = arith.truncf %82 : vector<80x128xf32> to vector<80x128xbf16>
    %c1_67 = arith.constant 1 : index
    %c0_68 = arith.constant 0 : index
    %c0_69 = arith.constant 0 : index
    %84 = vector.load %arg4[%c1_67, %c0_68, %c0_69] : memref<9x128x128xbf16, #tpu.memory_space<vmem>>, vector<1x128x128xbf16>
    %85 = vector.shape_cast %84 : vector<1x128x128xbf16> to vector<128x128xbf16>
    %cst_70 = arith.constant dense<0.000000e+00> : vector<80x128xf32>
    %86 = tpu.matmul %83, %85, %cst_70 {dimension_numbers = #tpu.dot_dimension_numbers<[1], [0], [0], [1], [0, 0, 1, 1], [], []>} : vector<80x128xbf16>, vector<128x128xbf16>, vector<80x128xf32> -> vector<80x128xf32>
    %87 = arith.addf %81, %86 : vector<80x128xf32>
    %c2_71 = arith.constant 2 : index
    %c0_72 = arith.constant 0 : index
    %88 = vector.load %arg8[%c2_71, %c0_72] : memref<102x128xf32, #tpu.memory_space<vmem>>, vector<80x128xf32>
    %89 = arith.truncf %88 : vector<80x128xf32> to vector<80x128xbf16>
    %c2_73 = arith.constant 2 : index
    %c0_74 = arith.constant 0 : index
    %c0_75 = arith.constant 0 : index
    %90 = vector.load %arg4[%c2_73, %c0_74, %c0_75] : memref<9x128x128xbf16, #tpu.memory_space<vmem>>, vector<1x128x128xbf16>
    %91 = vector.shape_cast %90 : vector<1x128x128xbf16> to vector<128x128xbf16>
    %cst_76 = arith.constant dense<0.000000e+00> : vector<80x128xf32>
    %92 = tpu.matmul %89, %91, %cst_76 {dimension_numbers = #tpu.dot_dimension_numbers<[1], [0], [0], [1], [0, 0, 1, 1], [], []>} : vector<80x128xbf16>, vector<128x128xbf16>, vector<80x128xf32> -> vector<80x128xf32>
    %93 = arith.addf %87, %92 : vector<80x128xf32>
    %c10_77 = arith.constant 10 : index
    %c0_78 = arith.constant 0 : index
    %94 = vector.load %arg8[%c10_77, %c0_78] : memref<102x128xf32, #tpu.memory_space<vmem>>, vector<80x128xf32>
    %95 = arith.truncf %94 : vector<80x128xf32> to vector<80x128xbf16>
    %c3_79 = arith.constant 3 : index
    %c0_80 = arith.constant 0 : index
    %c0_81 = arith.constant 0 : index
    %96 = vector.load %arg4[%c3_79, %c0_80, %c0_81] : memref<9x128x128xbf16, #tpu.memory_space<vmem>>, vector<1x128x128xbf16>
    %97 = vector.shape_cast %96 : vector<1x128x128xbf16> to vector<128x128xbf16>
    %cst_82 = arith.constant dense<0.000000e+00> : vector<80x128xf32>
    %98 = tpu.matmul %95, %97, %cst_82 {dimension_numbers = #tpu.dot_dimension_numbers<[1], [0], [0], [1], [0, 0, 1, 1], [], []>} : vector<80x128xbf16>, vector<128x128xbf16>, vector<80x128xf32> -> vector<80x128xf32>
    %99 = arith.addf %93, %98 : vector<80x128xf32>
    %c11_83 = arith.constant 11 : index
    %c0_84 = arith.constant 0 : index
    %100 = vector.load %arg8[%c11_83, %c0_84] : memref<102x128xf32, #tpu.memory_space<vmem>>, vector<80x128xf32>
    %101 = arith.truncf %100 : vector<80x128xf32> to vector<80x128xbf16>
    %c4_85 = arith.constant 4 : index
    %c0_86 = arith.constant 0 : index
    %c0_87 = arith.constant 0 : index
    %102 = vector.load %arg4[%c4_85, %c0_86, %c0_87] : memref<9x128x128xbf16, #tpu.memory_space<vmem>>, vector<1x128x128xbf16>
    %103 = vector.shape_cast %102 : vector<1x128x128xbf16> to vector<128x128xbf16>
    %cst_88 = arith.constant dense<0.000000e+00> : vector<80x128xf32>
    %104 = tpu.matmul %101, %103, %cst_88 {dimension_numbers = #tpu.dot_dimension_numbers<[1], [0], [0], [1], [0, 0, 1, 1], [], []>} : vector<80x128xbf16>, vector<128x128xbf16>, vector<80x128xf32> -> vector<80x128xf32>
    %105 = arith.addf %99, %104 : vector<80x128xf32>
    %c12_89 = arith.constant 12 : index
    %c0_90 = arith.constant 0 : index
    %106 = vector.load %arg8[%c12_89, %c0_90] : memref<102x128xf32, #tpu.memory_space<vmem>>, vector<80x128xf32>
    %107 = arith.truncf %106 : vector<80x128xf32> to vector<80x128xbf16>
    %c5_91 = arith.constant 5 : index
    %c0_92 = arith.constant 0 : index
    %c0_93 = arith.constant 0 : index
    %108 = vector.load %arg4[%c5_91, %c0_92, %c0_93] : memref<9x128x128xbf16, #tpu.memory_space<vmem>>, vector<1x128x128xbf16>
    %109 = vector.shape_cast %108 : vector<1x128x128xbf16> to vector<128x128xbf16>
    %cst_94 = arith.constant dense<0.000000e+00> : vector<80x128xf32>
    %110 = tpu.matmul %107, %109, %cst_94 {dimension_numbers = #tpu.dot_dimension_numbers<[1], [0], [0], [1], [0, 0, 1, 1], [], []>} : vector<80x128xbf16>, vector<128x128xbf16>, vector<80x128xf32> -> vector<80x128xf32>
    %111 = arith.addf %105, %110 : vector<80x128xf32>
    %c20_95 = arith.constant 20 : index
    %c0_96 = arith.constant 0 : index
    %112 = vector.load %arg8[%c20_95, %c0_96] : memref<102x128xf32, #tpu.memory_space<vmem>>, vector<80x128xf32>
    %113 = arith.truncf %112 : vector<80x128xf32> to vector<80x128xbf16>
    %c6_97 = arith.constant 6 : index
    %c0_98 = arith.constant 0 : index
    %c0_99 = arith.constant 0 : index
    %114 = vector.load %arg4[%c6_97, %c0_98, %c0_99] : memref<9x128x128xbf16, #tpu.memory_space<vmem>>, vector<1x128x128xbf16>
    %115 = vector.shape_cast %114 : vector<1x128x128xbf16> to vector<128x128xbf16>
    %cst_100 = arith.constant dense<0.000000e+00> : vector<80x128xf32>
    %116 = tpu.matmul %113, %115, %cst_100 {dimension_numbers = #tpu.dot_dimension_numbers<[1], [0], [0], [1], [0, 0, 1, 1], [], []>} : vector<80x128xbf16>, vector<128x128xbf16>, vector<80x128xf32> -> vector<80x128xf32>
    %117 = arith.addf %111, %116 : vector<80x128xf32>
    %c21_101 = arith.constant 21 : index
    %c0_102 = arith.constant 0 : index
    %118 = vector.load %arg8[%c21_101, %c0_102] : memref<102x128xf32, #tpu.memory_space<vmem>>, vector<80x128xf32>
    %119 = arith.truncf %118 : vector<80x128xf32> to vector<80x128xbf16>
    %c7_103 = arith.constant 7 : index
    %c0_104 = arith.constant 0 : index
    %c0_105 = arith.constant 0 : index
    %120 = vector.load %arg4[%c7_103, %c0_104, %c0_105] : memref<9x128x128xbf16, #tpu.memory_space<vmem>>, vector<1x128x128xbf16>
    %121 = vector.shape_cast %120 : vector<1x128x128xbf16> to vector<128x128xbf16>
    %cst_106 = arith.constant dense<0.000000e+00> : vector<80x128xf32>
    %122 = tpu.matmul %119, %121, %cst_106 {dimension_numbers = #tpu.dot_dimension_numbers<[1], [0], [0], [1], [0, 0, 1, 1], [], []>} : vector<80x128xbf16>, vector<128x128xbf16>, vector<80x128xf32> -> vector<80x128xf32>
    %123 = arith.addf %117, %122 : vector<80x128xf32>
    %c22_107 = arith.constant 22 : index
    %c0_108 = arith.constant 0 : index
    %124 = vector.load %arg8[%c22_107, %c0_108] : memref<102x128xf32, #tpu.memory_space<vmem>>, vector<80x128xf32>
    %125 = arith.truncf %124 : vector<80x128xf32> to vector<80x128xbf16>
    %c8_109 = arith.constant 8 : index
    %c0_110 = arith.constant 0 : index
    %c0_111 = arith.constant 0 : index
    %126 = vector.load %arg4[%c8_109, %c0_110, %c0_111] : memref<9x128x128xbf16, #tpu.memory_space<vmem>>, vector<1x128x128xbf16>
    %127 = vector.shape_cast %126 : vector<1x128x128xbf16> to vector<128x128xbf16>
    %cst_112 = arith.constant dense<0.000000e+00> : vector<80x128xf32>
    %128 = tpu.matmul %125, %127, %cst_112 {dimension_numbers = #tpu.dot_dimension_numbers<[1], [0], [0], [1], [0, 0, 1, 1], [], []>} : vector<80x128xbf16>, vector<128x128xbf16>, vector<80x128xf32> -> vector<80x128xf32>
    %129 = arith.addf %123, %128 : vector<80x128xf32>
    %c0_113 = arith.constant 0 : index
    %c0_114 = arith.constant 0 : index
    %130 = vector.load %arg5[%c0_113, %c0_114] : memref<1x128xf32, #tpu.memory_space<vmem>>, vector<1x128xf32>
    %131 = vector.broadcast %130 : vector<1x128xf32> to vector<80x128xf32>
    %132 = arith.addf %129, %131 : vector<80x128xf32>
    %cst_115 = arith.constant 0.000000e+00 : f32
    %133 = vector.broadcast %cst_115 : f32 to vector<80x128xf32>
    %134 = arith.maximumf %132, %133 : vector<80x128xf32>
    %c0_116 = arith.constant 0 : index
    %c0_117 = arith.constant 0 : index
    %c0_118 = arith.constant 0 : index
    %135 = vector.load %arg7[%c0_116, %c0_117, %c0_118] : memref<1x80x128xf32, #tpu.memory_space<vmem>>, vector<1x80x128xf32>
    %136 = vector.shape_cast %135 : vector<1x80x128xf32> to vector<80x128xf32>
    %137 = vector.shape_cast %134 : vector<80x128xf32> to vector<1x80x128xf32>
    tpu.vector_store %arg7[%c0_116, %c0_117, %c0_118], %137 {strides = array<i32>} : memref<1x80x128xf32, #tpu.memory_space<vmem>>, vector<1x80x128xf32>,
    return
  }
  func.func @transform_0(%arg0: i32) -> (i32, i32, i32) {
    %c0_i32 = arith.constant 0 : i32
    %c0_i32_0 = arith.constant 0 : i32
    %c0_i32_1 = arith.constant 0 : i32
    return %arg0, %c0_i32, %c0_i32_0 : i32, i32, i32
  }
  func.func @transform_1(%arg0: i32) -> (i32, i32, i32) {
    %c0_i32 = arith.constant 0 : i32
    %c0_i32_0 = arith.constant 0 : i32
    %c0_i32_1 = arith.constant 0 : i32
    %c0_i32_2 = arith.constant 0 : i32
    return %c0_i32, %c0_i32_0, %c0_i32_1 : i32, i32, i32
  }
  func.func @transform_2(%arg0: i32) -> (i32, i32) {
    %c0_i32 = arith.constant 0 : i32
    %c0_i32_0 = arith.constant 0 : i32
    %c0_i32_1 = arith.constant 0 : i32
    return %c0_i32, %c0_i32_0 : i32, i32
  }
  func.func @transform_3(%arg0: i32) -> (i32, i32, i32) {
    %c0_i32 = arith.constant 0 : i32
    %c0_i32_0 = arith.constant 0 : i32
    %c0_i32_1 = arith.constant 0 : i32
    %c0_i32_2 = arith.constant 0 : i32
    return %c0_i32, %c0_i32_0, %c0_i32_1 : i32, i32, i32
  }
  func.func @transform_4(%arg0: i32) -> (i32, i32) {
    %c0_i32 = arith.constant 0 : i32
    %c0_i32_0 = arith.constant 0 : i32
    %c0_i32_1 = arith.constant 0 : i32
    return %c0_i32, %c0_i32_0 : i32, i32
  }
  func.func @transform_5(%arg0: i32) -> (i32, i32) {
    %c0_i32 = arith.constant 0 : i32
    %c0_i32_0 = arith.constant 0 : i32
    %c0_i32_1 = arith.constant 0 : i32
    return %c0_i32, %c0_i32_0 : i32, i32
  }
  func.func @transform_6(%arg0: i32) -> (i32, i32, i32) {
    %c0_i32 = arith.constant 0 : i32
    %c0_i32_0 = arith.constant 0 : i32
    %c0_i32_1 = arith.constant 0 : i32
    return %arg0, %c0_i32, %c0_i32_0 : i32, i32, i32
  }
}

</mosaic_0001>

<llo_original>
// kernel: tile.10
$region0: #{tile.10}
  #allocation0 [shape = 's32[1]{0}', space=sflag, size = 0x4, scoped, tag = 'scoped memory for tile.10']
  %s0 = inlined_call_operand.vmem [shape: f32[8], index: 0, kind: input, shape index: {}]
  %s1 = inlined_call_operand.vmem [shape: f32[16,8], index: 1, kind: output, shape index: {}]
  // Predicated region
  $region2: #{tile.10} parent=0 // pred_check
    _
  $region3: #{tile.10} parent=0 // pred_check_branch
    %3 = sbr.rel (0) target = $region5
  $region4: #{tile.10} parent=0 // pred_region
    _
  $region5: #{tile.10} parent=0 // pred_fallthru
    _
  %v4 = vld [vmem:[%s0] ss:$0 sm:$0xff]
  %5 = vst [vmem:[%s1] sm:$0xff] %v4
  %s6 = scalar_lea.vmem %s1, 8
  %7 = vst [vmem:[%s6] sm:$0xff] %v4

// kernel: tile.11
$region0: #{tile.11}
  %s0 = inlined_call_operand.vmem [shape: f32[16,8], index: 0, kind: input, shape index: {}]
  %s1 = inlined_call_operand.vmem [shape: f32[1,128], index: 1, kind: output, shape index: {}]
  $region1: #{tile.11} parent=0
    #allocation0 [shape = 'u8[4096]{0}', space=vmem, size = 0x1000, scoped, tag = 'scoped mem for output reshape']
    %v2 = vld [vmem:[%s0] sm:$0x1]
    %vm3 = vcmask 64512
    %4 = vst.msk [vmem:[#allocation0] sm:$0x1] %vm3, %v2
    %s5 = scalar_lea.vmem %s0, 15
    %v6 = vld [vmem:[%s5] sm:$0x1]
    %7 = vrot.lane.b32.xlu0 %v6, 120
    %v8 = vpop.permute.xlu0 %7
    %vm9 = vcmask 1048512
    %10 = vst.msk [vmem:[#allocation0] sm:$0x1] %vm9, %v8
    %s11 = scalar_lea.vmem %s0, 14
    %v12 = vld [vmem:[%s11] sm:$0x1]
    %13 = vrot.lane.b32.xlu0 %v12, 112
    %v14 = vpop.permute.xlu0 %13
    %vm15 = vcmask 982912
    %16 = vst.msk [vmem:[#allocation0] sm:$0x1] %vm15, %v14
    %s17 = scalar_lea.vmem %s0, 13
    %v18 = vld [vmem:[%s17] sm:$0x1]
    %19 = vrot.lane.b32.xlu0 %v18, 104
    %v20 = vpop.permute.xlu0 %19
    %vm21 = vcmask 917312
    %22 = vst.msk [vmem:[#allocation0] sm:$0x1] %vm21, %v20
    %s23 = scalar_lea.vmem %s0, 12
    %v24 = vld [vmem:[%s23] sm:$0x1]
    %25 = vrot.lane.b32.xlu0 %v24, 96
    %v26 = vpop.permute.xlu0 %25
    %vm27 = vcmask 851712
    %28 = vst.msk [vmem:[#allocation0] sm:$0x1] %vm27, %v26
    %s29 = scalar_lea.vmem %s0, 11
    %v30 = vld [vmem:[%s29] sm:$0x1]
    %31 = vrot.lane.b32.xlu0 %v30, 88
    %v32 = vpop.permute.xlu0 %31
    %vm33 = vcmask 786112
    %34 = vst.msk [vmem:[#allocation0] sm:$0x1] %vm33, %v32
    %s35 = scalar_lea.vmem %s0, 10
    %v36 = vld [vmem:[%s35] sm:$0x1]
    %37 = vrot.lane.b32.xlu0 %v36, 80
    %v38 = vpop.permute.xlu0 %37
    %vm39 = vcmask 720512
    %40 = vst.msk [vmem:[#allocation0] sm:$0x1] %vm39, %v38
    %s41 = scalar_lea.vmem %s0, 9
    %v42 = vld [vmem:[%s41] sm:$0x1]
    %43 = vrot.lane.b32.xlu0 %v42, 72
    %v44 = vpop.permute.xlu0 %43
    %vm45 = vcmask 654912
    %46 = vst.msk [vmem:[#allocation0] sm:$0x1] %vm45, %v44
    %s47 = scalar_lea.vmem %s0, 8
    %v48 = vld [vmem:[%s47] sm:$0x1]
    %49 = vrot.lane.b32.xlu0 %v48, 64
    %v50 = vpop.permute.xlu0 %49
    %vm51 = vcmask 589312
    %52 = vst.msk [vmem:[#allocation0] sm:$0x1] %vm51, %v50
    %s53 = scalar_lea.vmem %s0, 7
    %v54 = vld [vmem:[%s53] sm:$0x1]
    %55 = vrot.lane.b32.xlu0 %v54, 56
    %v56 = vpop.permute.xlu0 %55
    %vm57 = vcmask 523712
    %58 = vst.msk [vmem:[#allocation0] sm:$0x1] %vm57, %v56
    %s59 = scalar_lea.vmem %s0, 6
    %v60 = vld [vmem:[%s59] sm:$0x1]
    %61 = vrot.lane.b32.xlu0 %v60, 48
    %v62 = vpop.permute.xlu0 %61
    %vm63 = vcmask 458112
    %64 = vst.msk [vmem:[#allocation0] sm:$0x1] %vm63, %v62
    %s65 = scalar_lea.vmem %s0, 5
    %v66 = vld [vmem:[%s65] sm:$0x1]
    %67 = vrot.lane.b32.xlu0 %v66, 40
    %v68 = vpop.permute.xlu0 %67
    %vm69 = vcmask 392512
    %70 = vst.msk [vmem:[#allocation0] sm:$0x1] %vm69, %v68
    %s71 = scalar_lea.vmem %s0, 4
    %v72 = vld [vmem:[%s71] sm:$0x1]
    %73 = vrot.lane.b32.xlu0 %v72, 32
    %v74 = vpop.permute.xlu0 %73
    %vm75 = vcmask 326912
    %76 = vst.msk [vmem:[#allocation0] sm:$0x1] %vm75, %v74
    %s77 = scalar_lea.vmem %s0, 3
    %v78 = vld [vmem:[%s77] sm:$0x1]
    %79 = vrot.lane.b32.xlu0 %v78, 24
    %v80 = vpop.permute.xlu0 %79
    %vm81 = vcmask 261312
    %82 = vst.msk [vmem:[#allocation0] sm:$0x1] %vm81, %v80
    %s83 = scalar_lea.vmem %s0, 2
    %v84 = vld [vmem:[%s83] sm:$0x1]
    %85 = vrot.lane.b32.xlu0 %v84, 16
    %v86 = vpop.permute.xlu0 %85
    %vm87 = vcmask 195712
    %88 = vst.msk [vmem:[#allocation0] sm:$0x1] %vm87, %v86
    %s89 = scalar_lea.vmem %s0, 1
    %v90 = vld [vmem:[%s89] sm:$0x1]
    %91 = vrot.lane.b32.xlu0 %v90, 8
    %v92 = vpop.permute.xlu0 %91
    %vm93 = vcmask 130112
    %94 = vst.msk [vmem:[#allocation0] sm:$0x1] %vm93, %v92
    %s96 = ssub.s32 2, 1
    %v97 = vld [vmem:[#allocation0] sm:%s96]
    %s99 = ssub.s32 2, 1
    %100 = vst [vmem:[%s1] sm:%s99] %v97

// kernel: a_call__.1
$region0: #{a_call__.1}
  #allocation0 [shape = 'u32[]', space=smem, size = 0x4, offset = 0x4, fixed_abs, tag = 'smem constant byte address 0x4 - core index']
  #allocation1 [shape = 'u32[72,128]{1,0:T(1,128)}', space=vmem, size = 0x9000, scoped, tag = 'internal scratch']
  #allocation2 [shape = 'f32[102,128]{1,0:T(8,128)}', space=vmem, size = 0xd000, scoped, tag = 'scratch operand']
  %s0 = inlined_call_operand.vmem [shape: f32[2,102,64], index: 0, kind: input, shape index: {}]
  %s1 = inlined_call_operand.vmem [shape: bf16[9,64,128], index: 1, kind: input, shape index: {}]
  %s2 = inlined_call_operand.vmem [shape: f32[1,128], index: 2, kind: input, shape index: {}]
  %s3 = inlined_call_operand.vmem [shape: bf16[9,128,128], index: 3, kind: input, shape index: {}]
  %s4 = inlined_call_operand.vmem [shape: f32[1,128], index: 4, kind: input, shape index: {}]
  %s5 = inlined_call_operand.vmem [shape: f32[80,1], index: 5, kind: input, shape index: {}]
  %s6 = inlined_call_operand.vmem [shape: f32[2,80,128], index: 6, kind: output, shape index: {}]
  %s7 = sld [smem:[#allocation0]]
  $region57: #{a_call__.1} parent=0
    _
  %s9 = ssub.s32 1, %s7
  %s10 = scalar_select 0, %s9, %s7
  loop: start=0, step=1, limit=4
  $region2: #{a_call__.1} parent=0 // loop_pre_header
    _
  $region3: #{a_call__.1} parent=0 // loop_header
    %s12 = sphi 0, %s16
    %p13 = scmp.ge.s32.totalorder %s12, 4
    %s22 = sphi 0, %s24
    %s25 = sphi 0, %s22
    %s26 = sphi 0, %s25
    %s42 = sphi 0, %s26
    %s46 = sphi 0, %s46
    %s48 = sphi 0, %s46
    %s49 = sphi 0, %s48
    %s63 = sphi 0, %s49
    %s67 = sphi 0, %s67
    %s69 = sphi 0, %s67
    %s70 = sphi 0, %s69
    %s84 = sphi 0, %s70
    %s88 = sphi 0, %s88
    %s90 = sphi 0, %s88
    %s91 = sphi 0, %s90
    %s105 = sphi 0, %s91
    %s109 = sphi 0, %s109
    %s111 = sphi 0, %s109
    %s112 = sphi 0, %s111
    %s126 = sphi 0, %s112
    %s130 = sphi 0, %s130
    %s132 = sphi 0, %s130
    %s133 = sphi 0, %s132
    %s147 = sphi 0, %s133
    %s153 = sphi 0, %s155
    %s156 = sphi 0, %s153
    %s157 = sphi 0, %s156
    %s173 = sphi 0, %s157
  $region4: #{a_call__.1} parent=0 // loop_header_branch
    %15 = sbr.rel (%p13) target = $region8
  $region5: #{a_call__.1} parent=0 // loop_body
    %s17 = ssub.s32 %s12, 1
    %s18 = ssub.s32 %s12, 2
    %s19 = sadd.s32 %s12, 1
    %s20 = ssub.s32 %s12, %s19
    %p21 = scmp.eq.s32.totalorder %s20, 0
    %s23 = sadd.s32 %s22, 1
    %s24 = scalar_select %p21, %s22, %s23
    %p27 = pneg %p21
    %p28 = scmp.eq.s32.totalorder %s12, 1
    %p29 = por %p27, %p28
    %p30 = scmp.ne.s32.totalorder %s22, %s25
    %p31 = scmp.eq.s32.totalorder %s12, 0
    %p32 = por %p30, %p31
    %p33 = scmp.ne.s32.totalorder %s22, %s25
    %p34 = scmp.eq.s32.totalorder %s17, 1
    %p35 = por %p33, %p34
    %p36 = scmp.ne.s32.totalorder %s25, %s26
    %p37 = scmp.eq.s32.totalorder %s17, 0
    %p38 = por %p36, %p37
    %p39 = scmp.ne.s32.totalorder %s25, %s26
    %p40 = scmp.eq.s32.totalorder %s18, 1
    %p41 = por %p39, %p40
    %p43 = scmp.ne.s32.totalorder %s26, %s42
    %p44 = scmp.eq.s32.totalorder %s18, 0
    %p45 = por %p43, %p44
    %s47 = sadd.s32 %s46, 1
    %p50 = scmp.eq.s32.totalorder %s12, 1
    %p51 = scmp.ne.s32.totalorder %s46, %s48
    %p52 = scmp.eq.s32.totalorder %s12, 0
    %p53 = por %p51, %p52
    %p54 = scmp.ne.s32.totalorder %s46, %s48
    %p55 = scmp.eq.s32.totalorder %s17, 1
    %p56 = por %p54, %p55
    %p57 = scmp.ne.s32.totalorder %s48, %s49
    %p58 = scmp.eq.s32.totalorder %s17, 0
    %p59 = por %p57, %p58
    %p60 = scmp.ne.s32.totalorder %s48, %s49
    %p61 = scmp.eq.s32.totalorder %s18, 1
    %p62 = por %p60, %p61
    %p64 = scmp.ne.s32.totalorder %s49, %s63
    %p65 = scmp.eq.s32.totalorder %s18, 0
    %p66 = por %p64, %p65
    %s68 = sadd.s32 %s67, 1
    %p71 = scmp.eq.s32.totalorder %s12, 1
    %p72 = scmp.ne.s32.totalorder %s67, %s69
    %p73 = scmp.eq.s32.totalorder %s12, 0
    %p74 = por %p72, %p73
    %p75 = scmp.ne.s32.totalorder %s67, %s69
    %p76 = scmp.eq.s32.totalorder %s17, 1
    %p77 = por %p75, %p76
    %p78 = scmp.ne.s32.totalorder %s69, %s70
    %p79 = scmp.eq.s32.totalorder %s17, 0
    %p80 = por %p78, %p79
    %p81 = scmp.ne.s32.totalorder %s69, %s70
    %p82 = scmp.eq.s32.totalorder %s18, 1
    %p83 = por %p81, %p82
    %p85 = scmp.ne.s32.totalorder %s70, %s84
    %p86 = scmp.eq.s32.totalorder %s18, 0
    %p87 = por %p85, %p86
    %s89 = sadd.s32 %s88, 1
    %p92 = scmp.eq.s32.totalorder %s12, 1
    %p93 = scmp.ne.s32.totalorder %s88, %s90
    %p94 = scmp.eq.s32.totalorder %s12, 0
    %p95 = por %p93, %p94
    %p96 = scmp.ne.s32.totalorder %s88, %s90
    %p97 = scmp.eq.s32.totalorder %s17, 1
    %p98 = por %p96, %p97
    %p99 = scmp.ne.s32.totalorder %s90, %s91
    %p100 = scmp.eq.s32.totalorder %s17, 0
    %p101 = por %p99, %p100
    %p102 = scmp.ne.s32.totalorder %s90, %s91
    %p103 = scmp.eq.s32.totalorder %s18, 1
    %p104 = por %p102, %p103
    %p106 = scmp.ne.s32.totalorder %s91, %s105
    %p107 = scmp.eq.s32.totalorder %s18, 0
    %p108 = por %p106, %p107
    %s110 = sadd.s32 %s109, 1
    %p113 = scmp.eq.s32.totalorder %s12, 1
    %p114 = scmp.ne.s32.totalorder %s109, %s111
    %p115 = scmp.eq.s32.totalorder %s12, 0
    %p116 = por %p114, %p115
    %p117 = scmp.ne.s32.totalorder %s109, %s111
    %p118 = scmp.eq.s32.totalorder %s17, 1
    %p119 = por %p117, %p118
    %p120 = scmp.ne.s32.totalorder %s111, %s112
    %p121 = scmp.eq.s32.totalorder %s17, 0
    %p122 = por %p120, %p121
    %p123 = scmp.ne.s32.totalorder %s111, %s112
    %p124 = scmp.eq.s32.totalorder %s18, 1
    %p125 = por %p123, %p124
    %p127 = scmp.ne.s32.totalorder %s112, %s126
    %p128 = scmp.eq.s32.totalorder %s18, 0
    %p129 = por %p127, %p128
    %s131 = sadd.s32 %s130, 1
    %p134 = scmp.eq.s32.totalorder %s12, 1
    %p135 = scmp.ne.s32.totalorder %s130, %s132
    %p136 = scmp.eq.s32.totalorder %s12, 0
    %p137 = por %p135, %p136
    %p138 = scmp.ne.s32.totalorder %s130, %s132
    %p139 = scmp.eq.s32.totalorder %s17, 1
    %p140 = por %p138, %p139
    %p141 = scmp.ne.s32.totalorder %s132, %s133
    %p142 = scmp.eq.s32.totalorder %s17, 0
    %p143 = por %p141, %p142
    %p144 = scmp.ne.s32.totalorder %s132, %s133
    %p145 = scmp.eq.s32.totalorder %s18, 1
    %p146 = por %p144, %p145
    %p148 = scmp.ne.s32.totalorder %s133, %s147
    %p149 = scmp.eq.s32.totalorder %s18, 0
    %p150 = por %p148, %p149
    %s151 = ssub.s32 %s12, %s19
    %p152 = scmp.eq.s32.totalorder %s151, 0
    %s154 = sadd.s32 %s153, 1
    %s155 = scalar_select %p152, %s153, %s154
    %p158 = pneg %p152
    %p159 = scmp.eq.s32.totalorder %s12, 1
    %p160 = por %p158, %p159
    %p161 = scmp.ne.s32.totalorder %s153, %s156
    %p162 = scmp.eq.s32.totalorder %s12, 0
    %p163 = por %p161, %p162
    %p164 = scmp.ne.s32.totalorder %s153, %s156
    %p165 = scmp.eq.s32.totalorder %s17, 1
    %p166 = por %p164, %p165
    %p167 = scmp.ne.s32.totalorder %s156, %s157
    %p168 = scmp.eq.s32.totalorder %s17, 0
    %p169 = por %p167, %p168
    %p170 = scmp.ne.s32.totalorder %s156, %s157
    %p171 = scmp.eq.s32.totalorder %s18, 1
    %p172 = por %p170, %p171
    %p174 = scmp.ne.s32.totalorder %s157, %s173
    %p175 = scmp.eq.s32.totalorder %s18, 0
    %p176 = por %p174, %p175
    %p177 = scmp.le.s32.totalorder 1, %s12
    %p178 = scmp.lt.s32.totalorder %s12, 3
    %p179 = pnand %p177, %p178
    %p180 = pneg %p179
    // Predicated region
    $region9: #{a_call__.1} parent=5 // pred_check
      _
    $region10: #{a_call__.1} parent=5 // pred_check_branch
      %182 = sbr.rel (%p179) target = $region12
    $region11: #{a_call__.1} parent=5 // pred_region
      %s183 = ssub.s32 %s12, 1
      // Predicated region
      $region13: #{a_call__.1} parent=11 // pred_check
        %p184 = pneg %p59
      $region14: #{a_call__.1} parent=11 // pred_check_branch
        %186 = sbr.rel (%p184) target = $region16
      $region15: #{a_call__.1} parent=11 // pred_region
        _
      $region16: #{a_call__.1} parent=11 // pred_fallthru
        _
      // Predicated region
      $region17: #{a_call__.1} parent=11 // pred_check
        %p187 = pneg %p80
      $region18: #{a_call__.1} parent=11 // pred_check_branch
        %189 = sbr.rel (%p187) target = $region20
      $region19: #{a_call__.1} parent=11 // pred_region
        _
      $region20: #{a_call__.1} parent=11 // pred_fallthru
        _
      // Predicated region
      $region21: #{a_call__.1} parent=11 // pred_check
        %p190 = pneg %p101
      $region22: #{a_call__.1} parent=11 // pred_check_branch
        %192 = sbr.rel (%p190) target = $region24
      $region23: #{a_call__.1} parent=11 // pred_region
        _
      $region24: #{a_call__.1} parent=11 // pred_fallthru
        _
      // Predicated region
      $region25: #{a_call__.1} parent=11 // pred_check
        %p193 = pneg %p122
      $region26: #{a_call__.1} parent=11 // pred_check_branch
        %195 = sbr.rel (%p193) target = $region28
      $region27: #{a_call__.1} parent=11 // pred_region
        _
      $region28: #{a_call__.1} parent=11 // pred_fallthru
        _
      // Predicated region
      $region29: #{a_call__.1} parent=11 // pred_check
        %p196 = pneg %p143
      $region30: #{a_call__.1} parent=11 // pred_check_branch
        %198 = sbr.rel (%p196) target = $region32
      $region31: #{a_call__.1} parent=11 // pred_region
        _
      $region32: #{a_call__.1} parent=11 // pred_fallthru
        _
    $region12: #{a_call__.1} parent=5 // pred_fallthru
      _
    %p199 = scmp.lt.s32.totalorder %s12, 2
    // Predicated region
    $region33: #{a_call__.1} parent=5 // pred_check
      %p200 = pneg %p199
    $region34: #{a_call__.1} parent=5 // pred_check_branch
      %202 = sbr.rel (%p200) target = $region36
    $region35: #{a_call__.1} parent=5 // pred_region
      // Predicated region
      $region37: #{a_call__.1} parent=35 // pred_check
        %p203 = pneg %p32
      $region38: #{a_call__.1} parent=35 // pred_check_branch
        %205 = sbr.rel (%p203) target = $region40
      $region39: #{a_call__.1} parent=35 // pred_region
        %p206 = scmp.lt.s32.totalorder %s12, 1
        %s207 = scalar_select %p206, %s12, 1
        %s208 = smul.addr %s207, 13
        %s209 = smul.addr %s208, 8
        %s210 = scalar_lea.vmem %s0, %s209
      $region40: #{a_call__.1} parent=35 // pred_fallthru
        _
    $region36: #{a_call__.1} parent=5 // pred_fallthru
      _
    %p211 = scmp.le.s32.totalorder 1, %s12
    %p212 = scmp.lt.s32.totalorder %s12, 3
    %p213 = pnand %p211, %p212
    %p214 = pneg %p213
    // Predicated region
    $region41: #{a_call__.1} parent=5 // pred_check
      _
    $region42: #{a_call__.1} parent=5 // pred_check_branch
      %216 = sbr.rel (%p213) target = $region44
    $region43: #{a_call__.1} parent=5 // pred_region
      %s217 = ssub.s32 %s12, 1
      %p218 = scmp.lt.s32.totalorder %s17, 1
      %s219 = scalar_select %p218, %s17, 1
      %s220 = smul.addr %s219, 13
      %s221 = smul.addr %s220, 8
      %s222 = scalar_lea.vmem %s0, %s221
      %p223 = pneg %p38
      %p224 = pneg %p35
      %p225 = pneg %p59
      %p226 = pneg %p56
      %p227 = pneg %p80
      %p228 = pneg %p77
      %p229 = pneg %p101
      %p230 = pneg %p98
      %p231 = pneg %p122
      %p232 = pneg %p119
      %p233 = pneg %p143
      %p234 = pneg %p140
      %p235 = pneg %p169
      %p236 = pneg %p166
      %p237 = scmp.lt.s32.totalorder %s17, 1
      %s238 = scalar_select %p237, %s17, 1
      %s239 = smul.addr %s238, 10
      %s240 = smul.addr %s239, 8
      %s241 = scalar_lea.vmem %s6, %s240
      %p242 = scmp.lt.s32.totalorder %s17, 1
      %s243 = scalar_select %p242, %s17, 1
      %s244 = smul.addr %s243, 13
      %s245 = smul.addr %s244, 8
      %s246 = scalar_lea.vmem %s0, %s245
      %p247 = scmp.lt.s32.totalorder %s17, 1
      %s248 = scalar_select %p247, %s17, 1
      %s249 = smul.addr %s248, 10
      %s250 = smul.addr %s249, 8
      %s251 = scalar_lea.vmem %s6, %s250
      %v253 = vld [vmem:[%s246] sm:$0xff]
      %v254 = vld [vmem:[%s246 + $0x8] sm:$0xff]
      %v255 = vld [vmem:[%s246 + $0x10] sm:$0xff]
      %v256 = vld [vmem:[%s246 + $0x18] sm:$0xff]
      %v257 = vld [vmem:[%s246 + $0x20] sm:$0xff]
      %v258 = vld [vmem:[%s246 + $0x28] sm:$0xff]
      %v259 = vld [vmem:[%s246 + $0x30] sm:$0xff]
      %v260 = vld [vmem:[%s246 + $0x38] sm:$0xff]
      %v261 = vld [vmem:[%s246 + $0x40] sm:$0xff]
      %v262 = vld [vmem:[%s246 + $0x48] sm:$0xff]
      %v263 = vpack.c.bf16 %v254, %v253
      %v264 = vpack.c.bf16 %v256, %v255
      %v265 = vpack.c.bf16 %v258, %v257
      %v266 = vpack.c.bf16 %v260, %v259
      %v267 = vpack.c.bf16 %v262, %v261
      %v268 = vld [vmem:[%s1] sm:$0xf]
      %v269 = vld [vmem:[%s1 + $0x4] sm:$0xf]
      %v270 = vld [vmem:[%s1 + $0x8] sm:$0xf]
      %v271 = vld [vmem:[%s1 + $0xc] sm:$0xf]
      %v272 = vld [vmem:[%s1 + $0x10] sm:$0xf]
      %v273 = vld [vmem:[%s1 + $0x14] sm:$0xf]
      %v274 = vld [vmem:[%s1 + $0x18] sm:$0xf]
      %v275 = vld [vmem:[%s1 + $0x1c] sm:$0xf]
      %v276 = vld [vmem:[%s246 + $0x1] sm:$0xff]
      %v277 = vld [vmem:[%s246 + $0x9] sm:$0xff]
      %v278 = vld [vmem:[%s246 + $0x11] sm:$0xff]
      %v279 = vld [vmem:[%s246 + $0x19] sm:$0xff]
      %v280 = vld [vmem:[%s246 + $0x21] sm:$0xff]
      %v281 = vld [vmem:[%s246 + $0x29] sm:$0xff]
      %v282 = vld [vmem:[%s246 + $0x31] sm:$0xff]
      %v283 = vld [vmem:[%s246 + $0x39] sm:$0xff]
      %v284 = vld [vmem:[%s246 + $0x41] sm:$0xff]
      %v285 = vld [vmem:[%s246 + $0x49] sm:$0xff]
      %v286 = vpack.c.bf16 %v277, %v276
      %v287 = vpack.c.bf16 %v279, %v278
      %v288 = vpack.c.bf16 %v281, %v280
      %v289 = vpack.c.bf16 %v283, %v282
      %v290 = vpack.c.bf16 %v285, %v284
      %s291 = scalar_lea.vmem %s1, 32
      %v292 = vld [vmem:[%s291] sm:$0xf]
      %v293 = vld [vmem:[%s291 + $0x4] sm:$0xf]
      %v294 = vld [vmem:[%s291 + $0x8] sm:$0xf]
      %v295 = vld [vmem:[%s291 + $0xc] sm:$0xf]
      %v296 = vld [vmem:[%s291 + $0x10] sm:$0xf]
      %v297 = vld [vmem:[%s291 + $0x14] sm:$0xf]
      %v298 = vld [vmem:[%s291 + $0x18] sm:$0xf]
      %v299 = vld [vmem:[%s291 + $0x1c] sm:$0xf]
      %v308 = vunpack.c.l.b16 %v292
      %v309 = vunpack.c.l.b16 %v293
      %v310 = vunpack.c.l.b16 %v294
      %v311 = vunpack.c.l.b16 %v295
      %v312 = vunpack.c.l.b16 %v296
      %v313 = vunpack.c.l.b16 %v297
      %v314 = vunpack.c.l.b16 %v298
      %v315 = vunpack.c.l.b16 %v299
      %v316 = vpack.c.b16 %v309, %v308
      %v317 = vpack.c.b16 %v311, %v310
      %v318 = vpack.c.b16 %v313, %v312
      %v319 = vpack.c.b16 %v315, %v314
      %vm324 = vcmask 523264
      %v326 = vsel %vm324, %v286, 0
      %v329 = vsel %vm324, %v287, 0
      %v332 = vsel %vm324, %v288, 0
      %v335 = vsel %vm324, %v289, 0
      %v338 = vsel %vm324, %v290, 0
      %340 = vmatpush.bf16.msra.mxu0 0
      %341 = vmatpush.bf16.msra.mxu0 0
      %342 = vmatpush.bf16.msra.mxu0 0
      %343 = vmatpush.bf16.msra.mxu0 0
      %344 = vmatpush.bf16.msra.mxu0 %v319
      %345 = vmatpush.bf16.msra.mxu0 %v318
      %346 = vmatpush.bf16.msra.mxu0 %v317
      %347 = vmatpush.bf16.msra.mxu0 %v316
      %348 = vmatmul.bf16.gmra.mxu0 %v326
      %v349 = vpop.f32.mrf.mxu0
      %v350 = vadd.f32 0.0, %v349
      %v351 = vpop.f32.mrf.mxu0
      %v352 = vadd.f32 0.0, %v351
      %353 = vmatmul.bf16.gmra.mxu0 %v329
      %v354 = vpop.f32.mrf.mxu0
      %v355 = vadd.f32 0.0, %v354
      %v356 = vpop.f32.mrf.mxu0
      %v357 = vadd.f32 0.0, %v356
      %358 = vmatmul.bf16.gmra.mxu0 %v332
      %v359 = vpop.f32.mrf.mxu0
      %v360 = vadd.f32 0.0, %v359
      %v361 = vpop.f32.mrf.mxu0
      %v362 = vadd.f32 0.0, %v361
      %363 = vmatmul.bf16.gmra.mxu0 %v335
      %v364 = vpop.f32.mrf.mxu0
      %v365 = vadd.f32 0.0, %v364
      %v366 = vpop.f32.mrf.mxu0
      %v367 = vadd.f32 0.0, %v366
      %368 = vmatmul.bf16.gmra.mxu0 %v338
      %v369 = vpop.f32.mrf.mxu0
      %v370 = vadd.f32 0.0, %v369
      %v371 = vpop.f32.mrf.mxu0
      %v372 = vadd.f32 0.0, %v371
      %373 = vdwg.mxu0
      %v382 = vunpack.c.l.b16 %v268
      %v383 = vunpack.c.l.b16 %v269
      %v384 = vunpack.c.l.b16 %v270
      %v385 = vunpack.c.l.b16 %v271
      %v386 = vunpack.c.l.b16 %v272
      %v387 = vunpack.c.l.b16 %v273
      %v388 = vunpack.c.l.b16 %v274
      %v389 = vunpack.c.l.b16 %v275
      %v390 = vpack.c.b16 %v383, %v382
      %v391 = vpack.c.b16 %v385, %v384
      %v392 = vpack.c.b16 %v387, %v386
      %v393 = vpack.c.b16 %v389, %v388
      %v399 = vsel %vm324, %v263, 0
      %v402 = vsel %vm324, %v264, 0
      %v405 = vsel %vm324, %v265, 0
      %v408 = vsel %vm324, %v266, 0
      %v411 = vsel %vm324, %v267, 0
      %413 = vmatpush.bf16.msra.mxu0 0
      %414 = vmatpush.bf16.msra.mxu0 0
      %415 = vmatpush.bf16.msra.mxu0 0
      %416 = vmatpush.bf16.msra.mxu0 0
      %417 = vmatpush.bf16.msra.mxu0 %v393
      %418 = vmatpush.bf16.msra.mxu0 %v392
      %419 = vmatpush.bf16.msra.mxu0 %v391
      %420 = vmatpush.bf16.msra.mxu0 %v390
      %421 = vmatmul.bf16.gmra.mxu0 %v399
      %v422 = vpop.f32.mrf.mxu0
      %v423 = vadd.f32 %v350, %v422
      %v424 = vpop.f32.mrf.mxu0
      %v425 = vadd.f32 %v352, %v424
      %426 = vmatmul.bf16.gmra.mxu0 %v402
      %v427 = vpop.f32.mrf.mxu0
      %v428 = vadd.f32 %v355, %v427
      %v429 = vpop.f32.mrf.mxu0
      %v430 = vadd.f32 %v357, %v429
      %431 = vmatmul.bf16.gmra.mxu0 %v405
      %v432 = vpop.f32.mrf.mxu0
      %v433 = vadd.f32 %v360, %v432
      %v434 = vpop.f32.mrf.mxu0
      %v435 = vadd.f32 %v362, %v434
      %436 = vmatmul.bf16.gmra.mxu0 %v408
      %v437 = vpop.f32.mrf.mxu0
      %v438 = vadd.f32 %v365, %v437
      %v439 = vpop.f32.mrf.mxu0
      %v440 = vadd.f32 %v367, %v439
      %441 = vmatmul.bf16.gmra.mxu0 %v411
      %v442 = vpop.f32.mrf.mxu0
      %v443 = vadd.f32 %v370, %v442
      %v444 = vpop.f32.mrf.mxu0
      %v445 = vadd.f32 %v372, %v444
      %446 = vdwg.mxu0
      %v447 = vld [vmem:[%s246 + $0x2] sm:$0xff]
      %v448 = vld [vmem:[%s246 + $0xa] sm:$0xff]
      %v449 = vld [vmem:[%s246 + $0x12] sm:$0xff]
      %v450 = vld [vmem:[%s246 + $0x1a] sm:$0xff]
      %v451 = vld [vmem:[%s246 + $0x22] sm:$0xff]
      %v452 = vld [vmem:[%s246 + $0x2a] sm:$0xff]
      %v453 = vld [vmem:[%s246 + $0x32] sm:$0xff]
      %v454 = vld [vmem:[%s246 + $0x3a] sm:$0xff]
      %v455 = vld [vmem:[%s246 + $0x42] sm:$0xff]
      %v456 = vld [vmem:[%s246 + $0x4a] sm:$0xff]
      %v457 = vpack.c.bf16 %v448, %v447
      %v458 = vpack.c.bf16 %v450, %v449
      %v459 = vpack.c.bf16 %v452, %v451
      %v460 = vpack.c.bf16 %v454, %v453
      %v461 = vpack.c.bf16 %v456, %v455
      %s462 = scalar_lea.vmem %s1, 64
      %v463 = vld [vmem:[%s462] sm:$0xf]
      %v464 = vld [vmem:[%s462 + $0x4] sm:$0xf]
      %v465 = vld [vmem:[%s462 + $0x8] sm:$0xf]
      %v466 = vld [vmem:[%s462 + $0xc] sm:$0xf]
      %v467 = vld [vmem:[%s462 + $0x10] sm:$0xf]
      %v468 = vld [vmem:[%s462 + $0x14] sm:$0xf]
      %v469 = vld [vmem:[%s462 + $0x18] sm:$0xf]
      %v470 = vld [vmem:[%s462 + $0x1c] sm:$0xf]
      %v479 = vunpack.c.l.b16 %v463
      %v480 = vunpack.c.l.b16 %v464
      %v481 = vunpack.c.l.b16 %v465
      %v482 = vunpack.c.l.b16 %v466
      %v483 = vunpack.c.l.b16 %v467
      %v484 = vunpack.c.l.b16 %v468
      %v485 = vunpack.c.l.b16 %v469
      %v486 = vunpack.c.l.b16 %v470
      %v487 = vpack.c.b16 %v480, %v479
      %v488 = vpack.c.b16 %v482, %v481
      %v489 = vpack.c.b16 %v484, %v483
      %v490 = vpack.c.b16 %v486, %v485
      %v496 = vsel %vm324, %v457, 0
      %v499 = vsel %vm324, %v458, 0
      %v502 = vsel %vm324, %v459, 0
      %v505 = vsel %vm324, %v460, 0
      %v508 = vsel %vm324, %v461, 0
      %510 = vmatpush.bf16.msra.mxu0 0
      %511 = vmatpush.bf16.msra.mxu0 0
      %512 = vmatpush.bf16.msra.mxu0 0
      %513 = vmatpush.bf16.msra.mxu0 0
      %514 = vmatpush.bf16.msra.mxu0 %v490
      %515 = vmatpush.bf16.msra.mxu0 %v489
      %516 = vmatpush.bf16.msra.mxu0 %v488
      %517 = vmatpush.bf16.msra.mxu0 %v487
      %518 = vmatmul.bf16.gmra.mxu0 %v496
      %v519 = vpop.f32.mrf.mxu0
      %v520 = vadd.f32 0.0, %v519
      %v521 = vpop.f32.mrf.mxu0
      %v522 = vadd.f32 0.0, %v521
      %523 = vmatmul.bf16.gmra.mxu0 %v499
      %v524 = vpop.f32.mrf.mxu0
      %v525 = vadd.f32 0.0, %v524
      %v526 = vpop.f32.mrf.mxu0
      %v527 = vadd.f32 0.0, %v526
      %528 = vmatmul.bf16.gmra.mxu0 %v502
      %v529 = vpop.f32.mrf.mxu0
      %v530 = vadd.f32 0.0, %v529
      %v531 = vpop.f32.mrf.mxu0
      %v532 = vadd.f32 0.0, %v531
      %533 = vmatmul.bf16.gmra.mxu0 %v505
      %v534 = vpop.f32.mrf.mxu0
      %v535 = vadd.f32 0.0, %v534
      %v536 = vpop.f32.mrf.mxu0
      %v537 = vadd.f32 0.0, %v536
      %538 = vmatmul.bf16.gmra.mxu0 %v508
      %v539 = vpop.f32.mrf.mxu0
      %v540 = vadd.f32 0.0, %v539
      %v541 = vpop.f32.mrf.mxu0
      %v542 = vadd.f32 0.0, %v541
      %543 = vdwg.mxu0
      %v544 = vadd.f32 %v423, %v520
      %v545 = vadd.f32 %v425, %v522
      %v546 = vadd.f32 %v428, %v525
      %v547 = vadd.f32 %v430, %v527
      %v548 = vadd.f32 %v433, %v530
      %v549 = vadd.f32 %v435, %v532
      %v550 = vadd.f32 %v438, %v535
      %v551 = vadd.f32 %v440, %v537
      %v552 = vadd.f32 %v443, %v540
      %v553 = vadd.f32 %v445, %v542
      %v554 = vld [vmem:[%s246 + $0xa] sm:$0xff]
      %v555 = vld [vmem:[%s246 + $0x12] sm:$0xff]
      %v556 = vld [vmem:[%s246 + $0x1a] sm:$0xff]
      %v557 = vld [vmem:[%s246 + $0x22] sm:$0xff]
      %v558 = vld [vmem:[%s246 + $0x2a] sm:$0xff]
      %v559 = vld [vmem:[%s246 + $0x32] sm:$0xff]
      %v560 = vld [vmem:[%s246 + $0x3a] sm:$0xff]
      %v561 = vld [vmem:[%s246 + $0x42] sm:$0xff]
      %v562 = vld [vmem:[%s246 + $0x4a] sm:$0xff]
      %v563 = vld [vmem:[%s246 + $0x52] sm:$0xff]
      %v564 = vpack.c.bf16 %v555, %v554
      %v565 = vpack.c.bf16 %v557, %v556
      %v566 = vpack.c.bf16 %v559, %v558
      %v567 = vpack.c.bf16 %v561, %v560
      %v568 = vpack.c.bf16 %v563, %v562
      %s569 = scalar_lea.vmem %s1, 96
      %v570 = vld [vmem:[%s569] sm:$0xf]
      %v571 = vld [vmem:[%s569 + $0x4] sm:$0xf]
      %v572 = vld [vmem:[%s569 + $0x8] sm:$0xf]
      %v573 = vld [vmem:[%s569 + $0xc] sm:$0xf]
      %v574 = vld [vmem:[%s569 + $0x10] sm:$0xf]
      %v575 = vld [vmem:[%s569 + $0x14] sm:$0xf]
      %v576 = vld [vmem:[%s569 + $0x18] sm:$0xf]
      %v577 = vld [vmem:[%s569 + $0x1c] sm:$0xf]
      %v586 = vunpack.c.l.b16 %v570
      %v587 = vunpack.c.l.b16 %v571
      %v588 = vunpack.c.l.b16 %v572
      %v589 = vunpack.c.l.b16 %v573
      %v590 = vunpack.c.l.b16 %v574
      %v591 = vunpack.c.l.b16 %v575
      %v592 = vunpack.c.l.b16 %v576
      %v593 = vunpack.c.l.b16 %v577
      %v594 = vpack.c.b16 %v587, %v586
      %v595 = vpack.c.b16 %v589, %v588
      %v596 = vpack.c.b16 %v591, %v590
      %v597 = vpack.c.b16 %v593, %v592
      %v603 = vsel %vm324, %v564, 0
      %v606 = vsel %vm324, %v565, 0
      %v609 = vsel %vm324, %v566, 0
      %v612 = vsel %vm324, %v567, 0
      %v615 = vsel %vm324, %v568, 0
      %617 = vmatpush.bf16.msra.mxu0 0
      %618 = vmatpush.bf16.msra.mxu0 0
      %619 = vmatpush.bf16.msra.mxu0 0
      %620 = vmatpush.bf16.msra.mxu0 0
      %621 = vmatpush.bf16.msra.mxu0 %v597
      %622 = vmatpush.bf16.msra.mxu0 %v596
      %623 = vmatpush.bf16.msra.mxu0 %v595
      %624 = vmatpush.bf16.msra.mxu0 %v594
      %625 = vmatmul.bf16.gmra.mxu0 %v603
      %v626 = vpop.f32.mrf.mxu0
      %v627 = vadd.f32 0.0, %v626
      %v628 = vpop.f32.mrf.mxu0
      %v629 = vadd.f32 0.0, %v628
      %630 = vmatmul.bf16.gmra.mxu0 %v606
      %v631 = vpop.f32.mrf.mxu0
      %v632 = vadd.f32 0.0, %v631
      %v633 = vpop.f32.mrf.mxu0
      %v634 = vadd.f32 0.0, %v633
      %635 = vmatmul.bf16.gmra.mxu0 %v609
      %v636 = vpop.f32.mrf.mxu0
      %v637 = vadd.f32 0.0, %v636
      %v638 = vpop.f32.mrf.mxu0
      %v639 = vadd.f32 0.0, %v638
      %640 = vmatmul.bf16.gmra.mxu0 %v612
      %v641 = vpop.f32.mrf.mxu0
      %v642 = vadd.f32 0.0, %v641
      %v643 = vpop.f32.mrf.mxu0
      %v644 = vadd.f32 0.0, %v643
      %645 = vmatmul.bf16.gmra.mxu0 %v615
      %v646 = vpop.f32.mrf.mxu0
      %v647 = vadd.f32 0.0, %v646
      %v648 = vpop.f32.mrf.mxu0
      %v649 = vadd.f32 0.0, %v648
      %650 = vdwg.mxu0
      %v651 = vadd.f32 %v544, %v627
      %v652 = vadd.f32 %v545, %v629
      %v653 = vadd.f32 %v546, %v632
      %v654 = vadd.f32 %v547, %v634
      %v655 = vadd.f32 %v548, %v637
      %v656 = vadd.f32 %v549, %v639
      %v657 = vadd.f32 %v550, %v642
      %v658 = vadd.f32 %v551, %v644
      %v659 = vadd.f32 %v552, %v647
      %v660 = vadd.f32 %v553, %v649
      %v661 = vld [vmem:[%s246 + $0xb] sm:$0xff]
      %v662 = vld [vmem:[%s246 + $0x13] sm:$0xff]
      %v663 = vld [vmem:[%s246 + $0x1b] sm:$0xff]
      %v664 = vld [vmem:[%s246 + $0x23] sm:$0xff]
      %v665 = vld [vmem:[%s246 + $0x2b] sm:$0xff]
      %v666 = vld [vmem:[%s246 + $0x33] sm:$0xff]
      %v667 = vld [vmem:[%s246 + $0x3b] sm:$0xff]
      %v668 = vld [vmem:[%s246 + $0x43] sm:$0xff]
      %v669 = vld [vmem:[%s246 + $0x4b] sm:$0xff]
      %v670 = vld [vmem:[%s246 + $0x53] sm:$0xff]
      %v671 = vpack.c.bf16 %v662, %v661
      %v672 = vpack.c.bf16 %v664, %v663
      %v673 = vpack.c.bf16 %v666, %v665
      %v674 = vpack.c.bf16 %v668, %v667
      %v675 = vpack.c.bf16 %v670, %v669
      %s676 = scalar_lea.vmem %s1, 128
      %v677 = vld [vmem:[%s676] sm:$0xf]
      %v678 = vld [vmem:[%s676 + $0x4] sm:$0xf]
      %v679 = vld [vmem:[%s676 + $0x8] sm:$0xf]
      %v680 = vld [vmem:[%s676 + $0xc] sm:$0xf]
      %v681 = vld [vmem:[%s676 + $0x10] sm:$0xf]
      %v682 = vld [vmem:[%s676 + $0x14] sm:$0xf]
      %v683 = vld [vmem:[%s676 + $0x18] sm:$0xf]
      %v684 = vld [vmem:[%s676 + $0x1c] sm:$0xf]
      %v693 = vunpack.c.l.b16 %v677
      %v694 = vunpack.c.l.b16 %v678
      %v695 = vunpack.c.l.b16 %v679
      %v696 = vunpack.c.l.b16 %v680
      %v697 = vunpack.c.l.b16 %v681
      %v698 = vunpack.c.l.b16 %v682
      %v699 = vunpack.c.l.b16 %v683
      %v700 = vunpack.c.l.b16 %v684
      %v701 = vpack.c.b16 %v694, %v693
      %v702 = vpack.c.b16 %v696, %v695
      %v703 = vpack.c.b16 %v698, %v697
      %v704 = vpack.c.b16 %v700, %v699
      %v710 = vsel %vm324, %v671, 0
      %v713 = vsel %vm324, %v672, 0
      %v716 = vsel %vm324, %v673, 0
      %v719 = vsel %vm324, %v674, 0
      %v722 = vsel %vm324, %v675, 0
      %724 = vmatpush.bf16.msra.mxu0 0
      %725 = vmatpush.bf16.msra.mxu0 0
      %726 = vmatpush.bf16.msra.mxu0 0
      %727 = vmatpush.bf16.msra.mxu0 0
      %728 = vmatpush.bf16.msra.mxu0 %v704
      %729 = vmatpush.bf16.msra.mxu0 %v703
      %730 = vmatpush.bf16.msra.mxu0 %v702
      %731 = vmatpush.bf16.msra.mxu0 %v701
      %732 = vmatmul.bf16.gmra.mxu0 %v710
      %v733 = vpop.f32.mrf.mxu0
      %v734 = vadd.f32 0.0, %v733
      %v735 = vpop.f32.mrf.mxu0
      %v736 = vadd.f32 0.0, %v735
      %737 = vmatmul.bf16.gmra.mxu0 %v713
      %v738 = vpop.f32.mrf.mxu0
      %v739 = vadd.f32 0.0, %v738
      %v740 = vpop.f32.mrf.mxu0
      %v741 = vadd.f32 0.0, %v740
      %742 = vmatmul.bf16.gmra.mxu0 %v716
      %v743 = vpop.f32.mrf.mxu0
      %v744 = vadd.f32 0.0, %v743
      %v745 = vpop.f32.mrf.mxu0
      %v746 = vadd.f32 0.0, %v745
      %747 = vmatmul.bf16.gmra.mxu0 %v719
      %v748 = vpop.f32.mrf.mxu0
      %v749 = vadd.f32 0.0, %v748
      %v750 = vpop.f32.mrf.mxu0
      %v751 = vadd.f32 0.0, %v750
      %752 = vmatmul.bf16.gmra.mxu0 %v722
      %v753 = vpop.f32.mrf.mxu0
      %v754 = vadd.f32 0.0, %v753
      %v755 = vpop.f32.mrf.mxu0
      %v756 = vadd.f32 0.0, %v755
      %757 = vdwg.mxu0
      %v758 = vadd.f32 %v651, %v734
      %v759 = vadd.f32 %v652, %v736
      %v760 = vadd.f32 %v653, %v739
      %v761 = vadd.f32 %v654, %v741
      %v762 = vadd.f32 %v655, %v744
      %v763 = vadd.f32 %v656, %v746
      %v764 = vadd.f32 %v657, %v749
      %v765 = vadd.f32 %v658, %v751
      %v766 = vadd.f32 %v659, %v754
      %v767 = vadd.f32 %v660, %v756
      %v768 = vld [vmem:[%s246 + $0xc] sm:$0xff]
      %v769 = vld [vmem:[%s246 + $0x14] sm:$0xff]
      %v770 = vld [vmem:[%s246 + $0x1c] sm:$0xff]
      %v771 = vld [vmem:[%s246 + $0x24] sm:$0xff]
      %v772 = vld [vmem:[%s246 + $0x2c] sm:$0xff]
      %v773 = vld [vmem:[%s246 + $0x34] sm:$0xff]
      %v774 = vld [vmem:[%s246 + $0x3c] sm:$0xff]
      %v775 = vld [vmem:[%s246 + $0x44] sm:$0xff]
      %v776 = vld [vmem:[%s246 + $0x4c] sm:$0xff]
      %v777 = vld [vmem:[%s246 + $0x54] sm:$0xff]
      %v778 = vpack.c.bf16 %v769, %v768
      %v779 = vpack.c.bf16 %v771, %v770
      %v780 = vpack.c.bf16 %v773, %v772
      %v781 = vpack.c.bf16 %v775, %v774
      %v782 = vpack.c.bf16 %v777, %v776
      %s783 = scalar_lea.vmem %s1, 160
      %v784 = vld [vmem:[%s783] sm:$0xf]
      %v785 = vld [vmem:[%s783 + $0x4] sm:$0xf]
      %v786 = vld [vmem:[%s783 + $0x8] sm:$0xf]
      %v787 = vld [vmem:[%s783 + $0xc] sm:$0xf]
      %v788 = vld [vmem:[%s783 + $0x10] sm:$0xf]
      %v789 = vld [vmem:[%s783 + $0x14] sm:$0xf]
      %v790 = vld [vmem:[%s783 + $0x18] sm:$0xf]
      %v791 = vld [vmem:[%s783 + $0x1c] sm:$0xf]
      %v800 = vunpack.c.l.b16 %v784
      %v801 = vunpack.c.l.b16 %v785
      %v802 = vunpack.c.l.b16 %v786
      %v803 = vunpack.c.l.b16 %v787
      %v804 = vunpack.c.l.b16 %v788
      %v805 = vunpack.c.l.b16 %v789
      %v806 = vunpack.c.l.b16 %v790
      %v807 = vunpack.c.l.b16 %v791
      %v808 = vpack.c.b16 %v801, %v800
      %v809 = vpack.c.b16 %v803, %v802
      %v810 = vpack.c.b16 %v805, %v804
      %v811 = vpack.c.b16 %v807, %v806
      %v817 = vsel %vm324, %v778, 0
      %v820 = vsel %vm324, %v779, 0
      %v823 = vsel %vm324, %v780, 0
      %v826 = vsel %vm324, %v781, 0
      %v829 = vsel %vm324, %v782, 0
      %831 = vmatpush.bf16.msra.mxu0 0
      %832 = vmatpush.bf16.msra.mxu0 0
      %833 = vmatpush.bf16.msra.mxu0 0
      %834 = vmatpush.bf16.msra.mxu0 0
      %835 = vmatpush.bf16.msra.mxu0 %v811
      %836 = vmatpush.bf16.msra.mxu0 %v810
      %837 = vmatpush.bf16.msra.mxu0 %v809
      %838 = vmatpush.bf16.msra.mxu0 %v808
      %839 = vmatmul.bf16.gmra.mxu0 %v817
      %v840 = vpop.f32.mrf.mxu0
      %v841 = vadd.f32 0.0, %v840
      %v842 = vpop.f32.mrf.mxu0
      %v843 = vadd.f32 0.0, %v842
      %844 = vmatmul.bf16.gmra.mxu0 %v820
      %v845 = vpop.f32.mrf.mxu0
      %v846 = vadd.f32 0.0, %v845
      %v847 = vpop.f32.mrf.mxu0
      %v848 = vadd.f32 0.0, %v847
      %849 = vmatmul.bf16.gmra.mxu0 %v823
      %v850 = vpop.f32.mrf.mxu0
      %v851 = vadd.f32 0.0, %v850
      %v852 = vpop.f32.mrf.mxu0
      %v853 = vadd.f32 0.0, %v852
      %854 = vmatmul.bf16.gmra.mxu0 %v826
      %v855 = vpop.f32.mrf.mxu0
      %v856 = vadd.f32 0.0, %v855
      %v857 = vpop.f32.mrf.mxu0
      %v858 = vadd.f32 0.0, %v857
      %859 = vmatmul.bf16.gmra.mxu0 %v829
      %v860 = vpop.f32.mrf.mxu0
      %v861 = vadd.f32 0.0, %v860
      %v862 = vpop.f32.mrf.mxu0
      %v863 = vadd.f32 0.0, %v862
      %864 = vdwg.mxu0
      %v865 = vadd.f32 %v758, %v841
      %v866 = vadd.f32 %v759, %v843
      %v867 = vadd.f32 %v760, %v846
      %v868 = vadd.f32 %v761, %v848
      %v869 = vadd.f32 %v762, %v851
      %v870 = vadd.f32 %v763, %v853
      %v871 = vadd.f32 %v764, %v856
      %v872 = vadd.f32 %v765, %v858
      %v873 = vadd.f32 %v766, %v861
      %v874 = vadd.f32 %v767, %v863
      %v875 = vld [vmem:[%s246 + $0x14] sm:$0xff]
      %v876 = vld [vmem:[%s246 + $0x1c] sm:$0xff]
      %v877 = vld [vmem:[%s246 + $0x24] sm:$0xff]
      %v878 = vld [vmem:[%s246 + $0x2c] sm:$0xff]
      %v879 = vld [vmem:[%s246 + $0x34] sm:$0xff]
      %v880 = vld [vmem:[%s246 + $0x3c] sm:$0xff]
      %v881 = vld [vmem:[%s246 + $0x44] sm:$0xff]
      %v882 = vld [vmem:[%s246 + $0x4c] sm:$0xff]
      %v883 = vld [vmem:[%s246 + $0x54] sm:$0xff]
      %v884 = vld [vmem:[%s246 + $0x5c] sm:$0xff]
      %v885 = vpack.c.bf16 %v876, %v875
      %v886 = vpack.c.bf16 %v878, %v877
      %v887 = vpack.c.bf16 %v880, %v879
      %v888 = vpack.c.bf16 %v882, %v881
      %v889 = vpack.c.bf16 %v884, %v883
      %s890 = scalar_lea.vmem %s1, 192
      %v891 = vld [vmem:[%s890] sm:$0xf]
      %v892 = vld [vmem:[%s890 + $0x4] sm:$0xf]
      %v893 = vld [vmem:[%s890 + $0x8] sm:$0xf]
      %v894 = vld [vmem:[%s890 + $0xc] sm:$0xf]
      %v895 = vld [vmem:[%s890 + $0x10] sm:$0xf]
      %v896 = vld [vmem:[%s890 + $0x14] sm:$0xf]
      %v897 = vld [vmem:[%s890 + $0x18] sm:$0xf]
      %v898 = vld [vmem:[%s890 + $0x1c] sm:$0xf]
      %v907 = vunpack.c.l.b16 %v891
      %v908 = vunpack.c.l.b16 %v892
      %v909 = vunpack.c.l.b16 %v893
      %v910 = vunpack.c.l.b16 %v894
      %v911 = vunpack.c.l.b16 %v895
      %v912 = vunpack.c.l.b16 %v896
      %v913 = vunpack.c.l.b16 %v897
      %v914 = vunpack.c.l.b16 %v898
      %v915 = vpack.c.b16 %v908, %v907
      %v916 = vpack.c.b16 %v910, %v909
      %v917 = vpack.c.b16 %v912, %v911
      %v918 = vpack.c.b16 %v914, %v913
      %v924 = vsel %vm324, %v885, 0
      %v927 = vsel %vm324, %v886, 0
      %v930 = vsel %vm324, %v887, 0
      %v933 = vsel %vm324, %v888, 0
      %v936 = vsel %vm324, %v889, 0
      %938 = vmatpush.bf16.msra.mxu0 0
      %939 = vmatpush.bf16.msra.mxu0 0
      %940 = vmatpush.bf16.msra.mxu0 0
      %941 = vmatpush.bf16.msra.mxu0 0
      %942 = vmatpush.bf16.msra.mxu0 %v918
      %943 = vmatpush.bf16.msra.mxu0 %v917
      %944 = vmatpush.bf16.msra.mxu0 %v916
      %945 = vmatpush.bf16.msra.mxu0 %v915
      %946 = vmatmul.bf16.gmra.mxu0 %v924
      %v947 = vpop.f32.mrf.mxu0
      %v948 = vadd.f32 0.0, %v947
      %v949 = vpop.f32.mrf.mxu0
      %v950 = vadd.f32 0.0, %v949
      %951 = vmatmul.bf16.gmra.mxu0 %v927
      %v952 = vpop.f32.mrf.mxu0
      %v953 = vadd.f32 0.0, %v952
      %v954 = vpop.f32.mrf.mxu0
      %v955 = vadd.f32 0.0, %v954
      %956 = vmatmul.bf16.gmra.mxu0 %v930
      %v957 = vpop.f32.mrf.mxu0
      %v958 = vadd.f32 0.0, %v957
      %v959 = vpop.f32.mrf.mxu0
      %v960 = vadd.f32 0.0, %v959
      %961 = vmatmul.bf16.gmra.mxu0 %v933
      %v962 = vpop.f32.mrf.mxu0
      %v963 = vadd.f32 0.0, %v962
      %v964 = vpop.f32.mrf.mxu0
      %v965 = vadd.f32 0.0, %v964
      %966 = vmatmul.bf16.gmra.mxu0 %v936
      %v967 = vpop.f32.mrf.mxu0
      %v968 = vadd.f32 0.0, %v967
      %v969 = vpop.f32.mrf.mxu0
      %v970 = vadd.f32 0.0, %v969
      %971 = vdwg.mxu0
      %v972 = vadd.f32 %v865, %v948
      %v973 = vadd.f32 %v866, %v950
      %v974 = vadd.f32 %v867, %v953
      %v975 = vadd.f32 %v868, %v955
      %v976 = vadd.f32 %v869, %v958
      %v977 = vadd.f32 %v870, %v960
      %v978 = vadd.f32 %v871, %v963
      %v979 = vadd.f32 %v872, %v965
      %v980 = vadd.f32 %v873, %v968
      %v981 = vadd.f32 %v874, %v970
      %v982 = vld [vmem:[%s246 + $0x15] sm:$0xff]
      %v983 = vld [vmem:[%s246 + $0x1d] sm:$0xff]
      %v984 = vld [vmem:[%s246 + $0x25] sm:$0xff]
      %v985 = vld [vmem:[%s246 + $0x2d] sm:$0xff]
      %v986 = vld [vmem:[%s246 + $0x35] sm:$0xff]
      %v987 = vld [vmem:[%s246 + $0x3d] sm:$0xff]
      %v988 = vld [vmem:[%s246 + $0x45] sm:$0xff]
      %v989 = vld [vmem:[%s246 + $0x4d] sm:$0xff]
      %v990 = vld [vmem:[%s246 + $0x55] sm:$0xff]
      %v991 = vld [vmem:[%s246 + $0x5d] sm:$0xff]
      %v992 = vpack.c.bf16 %v983, %v982
      %v993 = vpack.c.bf16 %v985, %v984
      %v994 = vpack.c.bf16 %v987, %v986
      %v995 = vpack.c.bf16 %v989, %v988
      %v996 = vpack.c.bf16 %v991, %v990
      %s997 = scalar_lea.vmem %s1, 224
      %v998 = vld [vmem:[%s997] sm:$0xf]
      %v999 = vld [vmem:[%s997 + $0x4] sm:$0xf]
      %v1000 = vld [vmem:[%s997 + $0x8] sm:$0xf]
      %v1001 = vld [vmem:[%s997 + $0xc] sm:$0xf]
      %v1002 = vld [vmem:[%s997 + $0x10] sm:$0xf]
      %v1003 = vld [vmem:[%s997 + $0x14] sm:$0xf]
      %v1004 = vld [vmem:[%s997 + $0x18] sm:$0xf]
      %v1005 = vld [vmem:[%s997 + $0x1c] sm:$0xf]
      %v1014 = vunpack.c.l.b16 %v998
      %v1015 = vunpack.c.l.b16 %v999
      %v1016 = vunpack.c.l.b16 %v1000
      %v1017 = vunpack.c.l.b16 %v1001
      %v1018 = vunpack.c.l.b16 %v1002
      %v1019 = vunpack.c.l.b16 %v1003
      %v1020 = vunpack.c.l.b16 %v1004
      %v1021 = vunpack.c.l.b16 %v1005
      %v1022 = vpack.c.b16 %v1015, %v1014
      %v1023 = vpack.c.b16 %v1017, %v1016
      %v1024 = vpack.c.b16 %v1019, %v1018
      %v1025 = vpack.c.b16 %v1021, %v1020
      %v1031 = vsel %vm324, %v992, 0
      %v1034 = vsel %vm324, %v993, 0
      %v1037 = vsel %vm324, %v994, 0
      %v1040 = vsel %vm324, %v995, 0
      %v1043 = vsel %vm324, %v996, 0
      %1045 = vmatpush.bf16.msra.mxu0 0
      %1046 = vmatpush.bf16.msra.mxu0 0
      %1047 = vmatpush.bf16.msra.mxu0 0
      %1048 = vmatpush.bf16.msra.mxu0 0
      %1049 = vmatpush.bf16.msra.mxu0 %v1025
      %1050 = vmatpush.bf16.msra.mxu0 %v1024
      %1051 = vmatpush.bf16.msra.mxu0 %v1023
      %1052 = vmatpush.bf16.msra.mxu0 %v1022
      %1053 = vmatmul.bf16.gmra.mxu0 %v1031
      %v1054 = vpop.f32.mrf.mxu0
      %v1055 = vadd.f32 0.0, %v1054
      %v1056 = vpop.f32.mrf.mxu0
      %v1057 = vadd.f32 0.0, %v1056
      %1058 = vmatmul.bf16.gmra.mxu0 %v1034
      %v1059 = vpop.f32.mrf.mxu0
      %v1060 = vadd.f32 0.0, %v1059
      %v1061 = vpop.f32.mrf.mxu0
      %v1062 = vadd.f32 0.0, %v1061
      %1063 = vmatmul.bf16.gmra.mxu0 %v1037
      %v1064 = vpop.f32.mrf.mxu0
      %v1065 = vadd.f32 0.0, %v1064
      %v1066 = vpop.f32.mrf.mxu0
      %v1067 = vadd.f32 0.0, %v1066
      %1068 = vmatmul.bf16.gmra.mxu0 %v1040
      %v1069 = vpop.f32.mrf.mxu0
      %v1070 = vadd.f32 0.0, %v1069
      %v1071 = vpop.f32.mrf.mxu0
      %v1072 = vadd.f32 0.0, %v1071
      %1073 = vmatmul.bf16.gmra.mxu0 %v1043
      %v1074 = vpop.f32.mrf.mxu0
      %v1075 = vadd.f32 0.0, %v1074
      %v1076 = vpop.f32.mrf.mxu0
      %v1077 = vadd.f32 0.0, %v1076
      %1078 = vdwg.mxu0
      %v1079 = vadd.f32 %v972, %v1055
      %v1080 = vadd.f32 %v973, %v1057
      %v1081 = vadd.f32 %v974, %v1060
      %v1082 = vadd.f32 %v975, %v1062
      %v1083 = vadd.f32 %v976, %v1065
      %v1084 = vadd.f32 %v977, %v1067
      %v1085 = vadd.f32 %v978, %v1070
      %v1086 = vadd.f32 %v979, %v1072
      %v1087 = vadd.f32 %v980, %v1075
      %v1088 = vadd.f32 %v981, %v1077
      %v1089 = vld [vmem:[%s246 + $0x16] sm:$0xff]
      %v1090 = vld [vmem:[%s246 + $0x1e] sm:$0xff]
      %v1091 = vld [vmem:[%s246 + $0x26] sm:$0xff]
      %v1092 = vld [vmem:[%s246 + $0x2e] sm:$0xff]
      %v1093 = vld [vmem:[%s246 + $0x36] sm:$0xff]
      %v1094 = vld [vmem:[%s246 + $0x3e] sm:$0xff]
      %v1095 = vld [vmem:[%s246 + $0x46] sm:$0xff]
      %v1096 = vld [vmem:[%s246 + $0x4e] sm:$0xff]
      %v1097 = vld [vmem:[%s246 + $0x56] sm:$0xff]
      %v1098 = vld [vmem:[%s246 + $0x5e] sm:$0xff]
      %v1099 = vpack.c.bf16 %v1090, %v1089
      %v1100 = vpack.c.bf16 %v1092, %v1091
      %v1101 = vpack.c.bf16 %v1094, %v1093
      %v1102 = vpack.c.bf16 %v1096, %v1095
      %v1103 = vpack.c.bf16 %v1098, %v1097
      %s1104 = scalar_lea.vmem %s1, 256
      %v1105 = vld [vmem:[%s1104] sm:$0xf]
      %v1106 = vld [vmem:[%s1104 + $0x4] sm:$0xf]
      %v1107 = vld [vmem:[%s1104 + $0x8] sm:$0xf]
      %v1108 = vld [vmem:[%s1104 + $0xc] sm:$0xf]
      %v1109 = vld [vmem:[%s1104 + $0x10] sm:$0xf]
      %v1110 = vld [vmem:[%s1104 + $0x14] sm:$0xf]
      %v1111 = vld [vmem:[%s1104 + $0x18] sm:$0xf]
      %v1112 = vld [vmem:[%s1104 + $0x1c] sm:$0xf]
      %v1121 = vunpack.c.l.b16 %v1105
      %v1122 = vunpack.c.l.b16 %v1106
      %v1123 = vunpack.c.l.b16 %v1107
      %v1124 = vunpack.c.l.b16 %v1108
      %v1125 = vunpack.c.l.b16 %v1109
      %v1126 = vunpack.c.l.b16 %v1110
      %v1127 = vunpack.c.l.b16 %v1111
      %v1128 = vunpack.c.l.b16 %v1112
      %v1129 = vpack.c.b16 %v1122, %v1121
      %v1130 = vpack.c.b16 %v1124, %v1123
      %v1131 = vpack.c.b16 %v1126, %v1125
      %v1132 = vpack.c.b16 %v1128, %v1127
      %v1138 = vsel %vm324, %v1099, 0
      %v1141 = vsel %vm324, %v1100, 0
      %v1144 = vsel %vm324, %v1101, 0
      %v1147 = vsel %vm324, %v1102, 0
      %v1150 = vsel %vm324, %v1103, 0
      %1152 = vmatpush.bf16.msra.mxu0 0
      %1153 = vmatpush.bf16.msra.mxu0 0
      %1154 = vmatpush.bf16.msra.mxu0 0
      %1155 = vmatpush.bf16.msra.mxu0 0
      %1156 = vmatpush.bf16.msra.mxu0 %v1132
      %1157 = vmatpush.bf16.msra.mxu0 %v1131
      %1158 = vmatpush.bf16.msra.mxu0 %v1130
      %1159 = vmatpush.bf16.msra.mxu0 %v1129
      %1160 = vmatmul.bf16.gmra.mxu0 %v1138
      %v1161 = vpop.f32.mrf.mxu0
      %v1162 = vadd.f32 0.0, %v1161
      %v1163 = vpop.f32.mrf.mxu0
      %v1164 = vadd.f32 0.0, %v1163
      %1165 = vmatmul.bf16.gmra.mxu0 %v1141
      %v1166 = vpop.f32.mrf.mxu0
      %v1167 = vadd.f32 0.0, %v1166
      %v1168 = vpop.f32.mrf.mxu0
      %v1169 = vadd.f32 0.0, %v1168
      %1170 = vmatmul.bf16.gmra.mxu0 %v1144
      %v1171 = vpop.f32.mrf.mxu0
      %v1172 = vadd.f32 0.0, %v1171
      %v1173 = vpop.f32.mrf.mxu0
      %v1174 = vadd.f32 0.0, %v1173
      %1175 = vmatmul.bf16.gmra.mxu0 %v1147
      %v1176 = vpop.f32.mrf.mxu0
      %v1177 = vadd.f32 0.0, %v1176
      %v1178 = vpop.f32.mrf.mxu0
      %v1179 = vadd.f32 0.0, %v1178
      %1180 = vmatmul.bf16.gmra.mxu0 %v1150
      %v1181 = vpop.f32.mrf.mxu0
      %v1182 = vadd.f32 0.0, %v1181
      %v1183 = vpop.f32.mrf.mxu0
      %v1184 = vadd.f32 0.0, %v1183
      %1185 = vdwg.mxu0
      %v1186 = vadd.f32 %v1079, %v1162
      %v1187 = vadd.f32 %v1080, %v1164
      %v1188 = vadd.f32 %v1081, %v1167
      %v1189 = vadd.f32 %v1082, %v1169
      %v1190 = vadd.f32 %v1083, %v1172
      %v1191 = vadd.f32 %v1084, %v1174
      %v1192 = vadd.f32 %v1085, %v1177
      %v1193 = vadd.f32 %v1086, %v1179
      %v1194 = vadd.f32 %v1087, %v1182
      %v1195 = vadd.f32 %v1088, %v1184
      %v1196 = vld [vmem:[%s2] sm:$0x1]
      %v1198 = vperm.slane %v1196, 0
      %v1200 = vadd.f32 %v1186, %v1198
      %v1201 = vadd.f32 %v1187, %v1198
      %v1202 = vadd.f32 %v1188, %v1198
      %v1203 = vadd.f32 %v1189, %v1198
      %v1204 = vadd.f32 %v1190, %v1198
      %v1205 = vadd.f32 %v1191, %v1198
      %v1206 = vadd.f32 %v1192, %v1198
      %v1207 = vadd.f32 %v1193, %v1198
      %v1208 = vadd.f32 %v1194, %v1198
      %v1209 = vadd.f32 %v1195, %v1198
      %v1210 = vmax.f32 %v1200, 0.0
      %v1211 = vmax.f32 %v1201, 0.0
      %v1212 = vmax.f32 %v1202, 0.0
      %v1213 = vmax.f32 %v1203, 0.0
      %v1214 = vmax.f32 %v1204, 0.0
      %v1215 = vmax.f32 %v1205, 0.0
      %v1216 = vmax.f32 %v1206, 0.0
      %v1217 = vmax.f32 %v1207, 0.0
      %v1218 = vmax.f32 %v1208, 0.0
      %v1219 = vmax.f32 %v1209, 0.0
      %v1220 = vld [vmem:[%s5] sm:$0xff]
      %v1221 = vld [vmem:[%s5 + $0x8] sm:$0xff]
      %v1222 = vld [vmem:[%s5 + $0x10] sm:$0xff]
      %v1223 = vld [vmem:[%s5 + $0x18] sm:$0xff]
      %v1224 = vld [vmem:[%s5 + $0x20] sm:$0xff]
      %v1225 = vld [vmem:[%s5 + $0x28] sm:$0xff]
      %v1226 = vld [vmem:[%s5 + $0x30] sm:$0xff]
      %v1227 = vld [vmem:[%s5 + $0x38] sm:$0xff]
      %v1228 = vld [vmem:[%s5 + $0x40] sm:$0xff]
      %v1229 = vld [vmem:[%s5 + $0x48] sm:$0xff]
      %1231 = vset.pattern.permute.xlu0 0
      %1232 = vperm.xlu0 %1231, %v1220
      %v1233 = vpop.permute.xlu0 %1232
      %1236 = vset.pattern.permute.xlu0 0
      %1237 = vperm.xlu0 %1236, %v1221
      %v1238 = vpop.permute.xlu0 %1237
      %1241 = vset.pattern.permute.xlu0 0
      %1242 = vperm.xlu0 %1241, %v1222
      %v1243 = vpop.permute.xlu0 %1242
      %1246 = vset.pattern.permute.xlu0 0
      %1247 = vperm.xlu0 %1246, %v1223
      %v1248 = vpop.permute.xlu0 %1247
      %1251 = vset.pattern.permute.xlu0 0
      %1252 = vperm.xlu0 %1251, %v1224
      %v1253 = vpop.permute.xlu0 %1252
      %1256 = vset.pattern.permute.xlu0 0
      %1257 = vperm.xlu0 %1256, %v1225
      %v1258 = vpop.permute.xlu0 %1257
      %1261 = vset.pattern.permute.xlu0 0
      %1262 = vperm.xlu0 %1261, %v1226
      %v1263 = vpop.permute.xlu0 %1262
      %1266 = vset.pattern.permute.xlu0 0
      %1267 = vperm.xlu0 %1266, %v1227
      %v1268 = vpop.permute.xlu0 %1267
      %1271 = vset.pattern.permute.xlu0 0
      %1272 = vperm.xlu0 %1271, %v1228
      %v1273 = vpop.permute.xlu0 %1272
      %1276 = vset.pattern.permute.xlu0 0
      %1277 = vperm.xlu0 %1276, %v1229
      %v1278 = vpop.permute.xlu0 %1277
      %v1280 = vmul.f32 %v1210, %v1233
      %v1281 = vmul.f32 %v1211, %v1238
      %v1282 = vmul.f32 %v1212, %v1243
      %v1283 = vmul.f32 %v1213, %v1248
      %v1284 = vmul.f32 %v1214, %v1253
      %v1285 = vmul.f32 %v1215, %v1258
      %v1286 = vmul.f32 %v1216, %v1263
      %v1287 = vmul.f32 %v1217, %v1268
      %v1288 = vmul.f32 %v1218, %v1273
      %v1289 = vmul.f32 %v1219, %v1278
      %1290 = vst [vmem:[#allocation2] sm:$0xff] 0.0
      %1291 = vst [vmem:[#allocation2 + $0x8] sm:$0xff] 0.0
      %1292 = vst [vmem:[#allocation2 + $0x10] sm:$0xff] 0.0
      %1293 = vst [vmem:[#allocation2 + $0x18] sm:$0xff] 0.0
      %1294 = vst [vmem:[#allocation2 + $0x20] sm:$0xff] 0.0
      %1295 = vst [vmem:[#allocation2 + $0x28] sm:$0xff] 0.0
      %1296 = vst [vmem:[#allocation2 + $0x30] sm:$0xff] 0.0
      %1297 = vst [vmem:[#allocation2 + $0x38] sm:$0xff] 0.0
      %1298 = vst [vmem:[#allocation2 + $0x40] sm:$0xff] 0.0
      %1299 = vst [vmem:[#allocation2 + $0x48] sm:$0xff] 0.0
      %1300 = vst [vmem:[#allocation2 + $0x50] sm:$0xff] 0.0
      %1301 = vst [vmem:[#allocation2 + $0x58] sm:$0xff] 0.0
      %1302 = vst [vmem:[#allocation2 + $0x60] sm:$0x3f] 0.0
      %1303 = vst [vmem:[#allocation2 + $0xb] sm:$0xff] %v1280
      %1304 = vst [vmem:[#allocation2 + $0x13] sm:$0xff] %v1281
      %1305 = vst [vmem:[#allocation2 + $0x1b] sm:$0xff] %v1282
      %1306 = vst [vmem:[#allocation2 + $0x23] sm:$0xff] %v1283
      %1307 = vst [vmem:[#allocation2 + $0x2b] sm:$0xff] %v1284
      %1308 = vst [vmem:[#allocation2 + $0x33] sm:$0xff] %v1285
      %1309 = vst [vmem:[#allocation2 + $0x3b] sm:$0xff] %v1286
      %1310 = vst [vmem:[#allocation2 + $0x43] sm:$0xff] %v1287
      %1311 = vst [vmem:[#allocation2 + $0x4b] sm:$0xff] %v1288
      %1312 = vst [vmem:[#allocation2 + $0x53] sm:$0xff] %v1289
      %v1313 = vld [vmem:[#allocation2] sm:$0xff]
      %v1314 = vld [vmem:[#allocation2 + $0x8] sm:$0xff]
      %v1315 = vld [vmem:[#allocation2 + $0x10] sm:$0xff]
      %v1316 = vld [vmem:[#allocation2 + $0x18] sm:$0xff]
      %v1317 = vld [vmem:[#allocation2 + $0x20] sm:$0xff]
      %v1318 = vld [vmem:[#allocation2 + $0x28] sm:$0xff]
      %v1319 = vld [vmem:[#allocation2 + $0x30] sm:$0xff]
      %v1320 = vld [vmem:[#allocation2 + $0x38] sm:$0xff]
      %v1321 = vld [vmem:[#allocation2 + $0x40] sm:$0xff]
      %v1322 = vld [vmem:[#allocation2 + $0x48] sm:$0xff]
      %v1323 = vpack.c.bf16 %v1314, %v1313
      %v1324 = vpack.c.bf16 %v1316, %v1315
      %v1325 = vpack.c.bf16 %v1318, %v1317
      %v1326 = vpack.c.bf16 %v1320, %v1319
      %v1327 = vpack.c.bf16 %v1322, %v1321
      %v1328 = vld [vmem:[%s3] sm:$0xf]
      %v1329 = vld [vmem:[%s3 + $0x4] sm:$0xf]
      %v1330 = vld [vmem:[%s3 + $0x8] sm:$0xf]
      %v1331 = vld [vmem:[%s3 + $0xc] sm:$0xf]
      %v1332 = vld [vmem:[%s3 + $0x10] sm:$0xf]
      %v1333 = vld [vmem:[%s3 + $0x14] sm:$0xf]
      %v1334 = vld [vmem:[%s3 + $0x18] sm:$0xf]
      %v1335 = vld [vmem:[%s3 + $0x1c] sm:$0xf]
      %v1336 = vld [vmem:[%s3 + $0x20] sm:$0xf]
      %v1337 = vld [vmem:[%s3 + $0x24] sm:$0xf]
      %v1338 = vld [vmem:[%s3 + $0x28] sm:$0xf]
      %v1339 = vld [vmem:[%s3 + $0x2c] sm:$0xf]
      %v1340 = vld [vmem:[%s3 + $0x30] sm:$0xf]
      %v1341 = vld [vmem:[%s3 + $0x34] sm:$0xf]
      %v1342 = vld [vmem:[%s3 + $0x38] sm:$0xf]
      %v1343 = vld [vmem:[%s3 + $0x3c] sm:$0xf]
      %v1344 = vld [vmem:[#allocation2 + $0x1] sm:$0xff]
      %v1345 = vld [vmem:[#allocation2 + $0x9] sm:$0xff]
      %v1346 = vld [vmem:[#allocation2 + $0x11] sm:$0xff]
      %v1347 = vld [vmem:[#allocation2 + $0x19] sm:$0xff]
      %v1348 = vld [vmem:[#allocation2 + $0x21] sm:$0xff]
      %v1349 = vld [vmem:[#allocation2 + $0x29] sm:$0xff]
      %v1350 = vld [vmem:[#allocation2 + $0x31] sm:$0xff]
      %v1351 = vld [vmem:[#allocation2 + $0x39] sm:$0xff]
      %v1352 = vld [vmem:[#allocation2 + $0x41] sm:$0xff]
      %v1353 = vld [vmem:[#allocation2 + $0x49] sm:$0xff]
      %v1354 = vpack.c.bf16 %v1345, %v1344
      %v1355 = vpack.c.bf16 %v1347, %v1346
      %v1356 = vpack.c.bf16 %v1349, %v1348
      %v1357 = vpack.c.bf16 %v1351, %v1350
      %v1358 = vpack.c.bf16 %v1353, %v1352
      %s1359 = scalar_lea.vmem %s3, 64
      %v1360 = vld [vmem:[%s1359] sm:$0xf]
      %v1361 = vld [vmem:[%s1359 + $0x4] sm:$0xf]
      %v1362 = vld [vmem:[%s1359 + $0x8] sm:$0xf]
      %v1363 = vld [vmem:[%s1359 + $0xc] sm:$0xf]
      %v1364 = vld [vmem:[%s1359 + $0x10] sm:$0xf]
      %v1365 = vld [vmem:[%s1359 + $0x14] sm:$0xf]
      %v1366 = vld [vmem:[%s1359 + $0x18] sm:$0xf]
      %v1367 = vld [vmem:[%s1359 + $0x1c] sm:$0xf]
      %v1368 = vld [vmem:[%s1359 + $0x20] sm:$0xf]
      %v1369 = vld [vmem:[%s1359 + $0x24] sm:$0xf]
      %v1370 = vld [vmem:[%s1359 + $0x28] sm:$0xf]
      %v1371 = vld [vmem:[%s1359 + $0x2c] sm:$0xf]
      %v1372 = vld [vmem:[%s1359 + $0x30] sm:$0xf]
      %v1373 = vld [vmem:[%s1359 + $0x34] sm:$0xf]
      %v1374 = vld [vmem:[%s1359 + $0x38] sm:$0xf]
      %v1375 = vld [vmem:[%s1359 + $0x3c] sm:$0xf]
      %v1392 = vunpack.c.l.b16 %v1360
      %v1393 = vunpack.c.l.b16 %v1361
      %v1394 = vunpack.c.l.b16 %v1362
      %v1395 = vunpack.c.l.b16 %v1363
      %v1396 = vunpack.c.l.b16 %v1364
      %v1397 = vunpack.c.l.b16 %v1365
      %v1398 = vunpack.c.l.b16 %v1366
      %v1399 = vunpack.c.l.b16 %v1367
      %v1400 = vunpack.c.l.b16 %v1368
      %v1401 = vunpack.c.l.b16 %v1369
      %v1402 = vunpack.c.l.b16 %v1370
      %v1403 = vunpack.c.l.b16 %v1371
      %v1404 = vunpack.c.l.b16 %v1372
      %v1405 = vunpack.c.l.b16 %v1373
      %v1406 = vunpack.c.l.b16 %v1374
      %v1407 = vunpack.c.l.b16 %v1375
      %v1408 = vpack.c.b16 %v1393, %v1392
      %v1409 = vpack.c.b16 %v1395, %v1394
      %v1410 = vpack.c.b16 %v1397, %v1396
      %v1411 = vpack.c.b16 %v1399, %v1398
      %v1412 = vpack.c.b16 %v1401, %v1400
      %v1413 = vpack.c.b16 %v1403, %v1402
      %v1414 = vpack.c.b16 %v1405, %v1404
      %v1415 = vpack.c.b16 %v1407, %v1406
      %1424 = vmatpush.bf16.msra.mxu0 %v1415
      %1425 = vmatpush.bf16.msra.mxu0 %v1414
      %1426 = vmatpush.bf16.msra.mxu0 %v1413
      %1427 = vmatpush.bf16.msra.mxu0 %v1412
      %1428 = vmatpush.bf16.msra.mxu0 %v1411
      %1429 = vmatpush.bf16.msra.mxu0 %v1410
      %1430 = vmatpush.bf16.msra.mxu0 %v1409
      %1431 = vmatpush.bf16.msra.mxu0 %v1408
      %1432 = vmatmul.bf16.gmra.mxu0 %v1354
      %v1433 = vpop.f32.mrf.mxu0
      %v1434 = vadd.f32 0.0, %v1433
      %v1435 = vpop.f32.mrf.mxu0
      %v1436 = vadd.f32 0.0, %v1435
      %1437 = vmatmul.bf16.gmra.mxu0 %v1355
      %v1438 = vpop.f32.mrf.mxu0
      %v1439 = vadd.f32 0.0, %v1438
      %v1440 = vpop.f32.mrf.mxu0
      %v1441 = vadd.f32 0.0, %v1440
      %1442 = vmatmul.bf16.gmra.mxu0 %v1356
      %v1443 = vpop.f32.mrf.mxu0
      %v1444 = vadd.f32 0.0, %v1443
      %v1445 = vpop.f32.mrf.mxu0
      %v1446 = vadd.f32 0.0, %v1445
      %1447 = vmatmul.bf16.gmra.mxu0 %v1357
      %v1448 = vpop.f32.mrf.mxu0
      %v1449 = vadd.f32 0.0, %v1448
      %v1450 = vpop.f32.mrf.mxu0
      %v1451 = vadd.f32 0.0, %v1450
      %1452 = vmatmul.bf16.gmra.mxu0 %v1358
      %v1453 = vpop.f32.mrf.mxu0
      %v1454 = vadd.f32 0.0, %v1453
      %v1455 = vpop.f32.mrf.mxu0
      %v1456 = vadd.f32 0.0, %v1455
      %1457 = vdwg.mxu0
      %v1474 = vunpack.c.l.b16 %v1328
      %v1475 = vunpack.c.l.b16 %v1329
      %v1476 = vunpack.c.l.b16 %v1330
      %v1477 = vunpack.c.l.b16 %v1331
      %v1478 = vunpack.c.l.b16 %v1332
      %v1479 = vunpack.c.l.b16 %v1333
      %v1480 = vunpack.c.l.b16 %v1334
      %v1481 = vunpack.c.l.b16 %v1335
      %v1482 = vunpack.c.l.b16 %v1336
      %v1483 = vunpack.c.l.b16 %v1337
      %v1484 = vunpack.c.l.b16 %v1338
      %v1485 = vunpack.c.l.b16 %v1339
      %v1486 = vunpack.c.l.b16 %v1340
      %v1487 = vunpack.c.l.b16 %v1341
      %v1488 = vunpack.c.l.b16 %v1342
      %v1489 = vunpack.c.l.b16 %v1343
      %v1490 = vpack.c.b16 %v1475, %v1474
      %v1491 = vpack.c.b16 %v1477, %v1476
      %v1492 = vpack.c.b16 %v1479, %v1478
      %v1493 = vpack.c.b16 %v1481, %v1480
      %v1494 = vpack.c.b16 %v1483, %v1482
      %v1495 = vpack.c.b16 %v1485, %v1484
      %v1496 = vpack.c.b16 %v1487, %v1486
      %v1497 = vpack.c.b16 %v1489, %v1488
      %1506 = vmatpush.bf16.msra.mxu0 %v1497
      %1507 = vmatpush.bf16.msra.mxu0 %v1496
      %1508 = vmatpush.bf16.msra.mxu0 %v1495
      %1509 = vmatpush.bf16.msra.mxu0 %v1494
      %1510 = vmatpush.bf16.msra.mxu0 %v1493
      %1511 = vmatpush.bf16.msra.mxu0 %v1492
      %1512 = vmatpush.bf16.msra.mxu0 %v1491
      %1513 = vmatpush.bf16.msra.mxu0 %v1490
      %1514 = vmatmul.bf16.gmra.mxu0 %v1323
      %v1515 = vpop.f32.mrf.mxu0
      %v1516 = vadd.f32 %v1434, %v1515
      %v1517 = vpop.f32.mrf.mxu0
      %v1518 = vadd.f32 %v1436, %v1517
      %1519 = vmatmul.bf16.gmra.mxu0 %v1324
      %v1520 = vpop.f32.mrf.mxu0
      %v1521 = vadd.f32 %v1439, %v1520
      %v1522 = vpop.f32.mrf.mxu0
      %v1523 = vadd.f32 %v1441, %v1522
      %1524 = vmatmul.bf16.gmra.mxu0 %v1325
      %v1525 = vpop.f32.mrf.mxu0
      %v1526 = vadd.f32 %v1444, %v1525
      %v1527 = vpop.f32.mrf.mxu0
      %v1528 = vadd.f32 %v1446, %v1527
      %1529 = vmatmul.bf16.gmra.mxu0 %v1326
      %v1530 = vpop.f32.mrf.mxu0
      %v1531 = vadd.f32 %v1449, %v1530
      %v1532 = vpop.f32.mrf.mxu0
      %v1533 = vadd.f32 %v1451, %v1532
      %1534 = vmatmul.bf16.gmra.mxu0 %v1327
      %v1535 = vpop.f32.mrf.mxu0
      %v1536 = vadd.f32 %v1454, %v1535
      %v1537 = vpop.f32.mrf.mxu0
      %v1538 = vadd.f32 %v1456, %v1537
      %1539 = vdwg.mxu0
      %v1540 = vld [vmem:[#allocation2 + $0x2] sm:$0xff]
      %v1541 = vld [vmem:[#allocation2 + $0xa] sm:$0xff]
      %v1542 = vld [vmem:[#allocation2 + $0x12] sm:$0xff]
      %v1543 = vld [vmem:[#allocation2 + $0x1a] sm:$0xff]
      %v1544 = vld [vmem:[#allocation2 + $0x22] sm:$0xff]
      %v1545 = vld [vmem:[#allocation2 + $0x2a] sm:$0xff]
      %v1546 = vld [vmem:[#allocation2 + $0x32] sm:$0xff]
      %v1547 = vld [vmem:[#allocation2 + $0x3a] sm:$0xff]
      %v1548 = vld [vmem:[#allocation2 + $0x42] sm:$0xff]
      %v1549 = vld [vmem:[#allocation2 + $0x4a] sm:$0xff]
      %v1550 = vpack.c.bf16 %v1541, %v1540
      %v1551 = vpack.c.bf16 %v1543, %v1542
      %v1552 = vpack.c.bf16 %v1545, %v1544
      %v1553 = vpack.c.bf16 %v1547, %v1546
      %v1554 = vpack.c.bf16 %v1549, %v1548
      %s1555 = scalar_lea.vmem %s3, 128
      %v1556 = vld [vmem:[%s1555] sm:$0xf]
      %v1557 = vld [vmem:[%s1555 + $0x4] sm:$0xf]
      %v1558 = vld [vmem:[%s1555 + $0x8] sm:$0xf]
      %v1559 = vld [vmem:[%s1555 + $0xc] sm:$0xf]
      %v1560 = vld [vmem:[%s1555 + $0x10] sm:$0xf]
      %v1561 = vld [vmem:[%s1555 + $0x14] sm:$0xf]
      %v1562 = vld [vmem:[%s1555 + $0x18] sm:$0xf]
      %v1563 = vld [vmem:[%s1555 + $0x1c] sm:$0xf]
      %v1564 = vld [vmem:[%s1555 + $0x20] sm:$0xf]
      %v1565 = vld [vmem:[%s1555 + $0x24] sm:$0xf]
      %v1566 = vld [vmem:[%s1555 + $0x28] sm:$0xf]
      %v1567 = vld [vmem:[%s1555 + $0x2c] sm:$0xf]
      %v1568 = vld [vmem:[%s1555 + $0x30] sm:$0xf]
      %v1569 = vld [vmem:[%s1555 + $0x34] sm:$0xf]
      %v1570 = vld [vmem:[%s1555 + $0x38] sm:$0xf]
      %v1571 = vld [vmem:[%s1555 + $0x3c] sm:$0xf]
      %v1588 = vunpack.c.l.b16 %v1556
      %v1589 = vunpack.c.l.b16 %v1557
      %v1590 = vunpack.c.l.b16 %v1558
      %v1591 = vunpack.c.l.b16 %v1559
      %v1592 = vunpack.c.l.b16 %v1560
      %v1593 = vunpack.c.l.b16 %v1561
      %v1594 = vunpack.c.l.b16 %v1562
      %v1595 = vunpack.c.l.b16 %v1563
      %v1596 = vunpack.c.l.b16 %v1564
      %v1597 = vunpack.c.l.b16 %v1565
      %v1598 = vunpack.c.l.b16 %v1566
      %v1599 = vunpack.c.l.b16 %v1567
      %v1600 = vunpack.c.l.b16 %v1568
      %v1601 = vunpack.c.l.b16 %v1569
      %v1602 = vunpack.c.l.b16 %v1570
      %v1603 = vunpack.c.l.b16 %v1571
      %v1604 = vpack.c.b16 %v1589, %v1588
      %v1605 = vpack.c.b16 %v1591, %v1590
      %v1606 = vpack.c.b16 %v1593, %v1592
      %v1607 = vpack.c.b16 %v1595, %v1594
      %v1608 = vpack.c.b16 %v1597, %v1596
      %v1609 = vpack.c.b16 %v1599, %v1598
      %v1610 = vpack.c.b16 %v1601, %v1600
      %v1611 = vpack.c.b16 %v1603, %v1602
      %1620 = vmatpush.bf16.msra.mxu0 %v1611
      %1621 = vmatpush.bf16.msra.mxu0 %v1610
      %1622 = vmatpush.bf16.msra.mxu0 %v1609
      %1623 = vmatpush.bf16.msra.mxu0 %v1608
      %1624 = vmatpush.bf16.msra.mxu0 %v1607
      %1625 = vmatpush.bf16.msra.mxu0 %v1606
      %1626 = vmatpush.bf16.msra.mxu0 %v1605
      %1627 = vmatpush.bf16.msra.mxu0 %v1604
      %1628 = vmatmul.bf16.gmra.mxu0 %v1550
      %v1629 = vpop.f32.mrf.mxu0
      %v1630 = vadd.f32 0.0, %v1629
      %v1631 = vpop.f32.mrf.mxu0
      %v1632 = vadd.f32 0.0, %v1631
      %1633 = vmatmul.bf16.gmra.mxu0 %v1551
      %v1634 = vpop.f32.mrf.mxu0
      %v1635 = vadd.f32 0.0, %v1634
      %v1636 = vpop.f32.mrf.mxu0
      %v1637 = vadd.f32 0.0, %v1636
      %1638 = vmatmul.bf16.gmra.mxu0 %v1552
      %v1639 = vpop.f32.mrf.mxu0
      %v1640 = vadd.f32 0.0, %v1639
      %v1641 = vpop.f32.mrf.mxu0
      %v1642 = vadd.f32 0.0, %v1641
      %1643 = vmatmul.bf16.gmra.mxu0 %v1553
      %v1644 = vpop.f32.mrf.mxu0
      %v1645 = vadd.f32 0.0, %v1644
      %v1646 = vpop.f32.mrf.mxu0
      %v1647 = vadd.f32 0.0, %v1646
      %1648 = vmatmul.bf16.gmra.mxu0 %v1554
      %v1649 = vpop.f32.mrf.mxu0
      %v1650 = vadd.f32 0.0, %v1649
      %v1651 = vpop.f32.mrf.mxu0
      %v1652 = vadd.f32 0.0, %v1651
      %1653 = vdwg.mxu0
      %v1654 = vadd.f32 %v1516, %v1630
      %v1655 = vadd.f32 %v1518, %v1632
      %v1656 = vadd.f32 %v1521, %v1635
      %v1657 = vadd.f32 %v1523, %v1637
      %v1658 = vadd.f32 %v1526, %v1640
      %v1659 = vadd.f32 %v1528, %v1642
      %v1660 = vadd.f32 %v1531, %v1645
      %v1661 = vadd.f32 %v1533, %v1647
      %v1662 = vadd.f32 %v1536, %v1650
      %v1663 = vadd.f32 %v1538, %v1652
      %v1664 = vld [vmem:[#allocation2 + $0xa] sm:$0xff]
      %v1665 = vld [vmem:[#allocation2 + $0x12] sm:$0xff]
      %v1666 = vld [vmem:[#allocation2 + $0x1a] sm:$0xff]
      %v1667 = vld [vmem:[#allocation2 + $0x22] sm:$0xff]
      %v1668 = vld [vmem:[#allocation2 + $0x2a] sm:$0xff]
      %v1669 = vld [vmem:[#allocation2 + $0x32] sm:$0xff]
      %v1670 = vld [vmem:[#allocation2 + $0x3a] sm:$0xff]
      %v1671 = vld [vmem:[#allocation2 + $0x42] sm:$0xff]
      %v1672 = vld [vmem:[#allocation2 + $0x4a] sm:$0xff]
      %v1673 = vld [vmem:[#allocation2 + $0x52] sm:$0xff]
      %v1674 = vpack.c.bf16 %v1665, %v1664
      %v1675 = vpack.c.bf16 %v1667, %v1666
      %v1676 = vpack.c.bf16 %v1669, %v1668
      %v1677 = vpack.c.bf16 %v1671, %v1670
      %v1678 = vpack.c.bf16 %v1673, %v1672
      %s1679 = scalar_lea.vmem %s3, 192
      %v1680 = vld [vmem:[%s1679] sm:$0xf]
      %v1681 = vld [vmem:[%s1679 + $0x4] sm:$0xf]
      %v1682 = vld [vmem:[%s1679 + $0x8] sm:$0xf]
      %v1683 = vld [vmem:[%s1679 + $0xc] sm:$0xf]
      %v1684 = vld [vmem:[%s1679 + $0x10] sm:$0xf]
      %v1685 = vld [vmem:[%s1679 + $0x14] sm:$0xf]
      %v1686 = vld [vmem:[%s1679 + $0x18] sm:$0xf]
      %v1687 = vld [vmem:[%s1679 + $0x1c] sm:$0xf]
      %v1688 = vld [vmem:[%s1679 + $0x20] sm:$0xf]
      %v1689 = vld [vmem:[%s1679 + $0x24] sm:$0xf]
      %v1690 = vld [vmem:[%s1679 + $0x28] sm:$0xf]
      %v1691 = vld [vmem:[%s1679 + $0x2c] sm:$0xf]
      %v1692 = vld [vmem:[%s1679 + $0x30] sm:$0xf]
      %v1693 = vld [vmem:[%s1679 + $0x34] sm:$0xf]
      %v1694 = vld [vmem:[%s1679 + $0x38] sm:$0xf]
      %v1695 = vld [vmem:[%s1679 + $0x3c] sm:$0xf]
      %v1712 = vunpack.c.l.b16 %v1680
      %v1713 = vunpack.c.l.b16 %v1681
      %v1714 = vunpack.c.l.b16 %v1682
      %v1715 = vunpack.c.l.b16 %v1683
      %v1716 = vunpack.c.l.b16 %v1684
      %v1717 = vunpack.c.l.b16 %v1685
      %v1718 = vunpack.c.l.b16 %v1686
      %v1719 = vunpack.c.l.b16 %v1687
      %v1720 = vunpack.c.l.b16 %v1688
      %v1721 = vunpack.c.l.b16 %v1689
      %v1722 = vunpack.c.l.b16 %v1690
      %v1723 = vunpack.c.l.b16 %v1691
      %v1724 = vunpack.c.l.b16 %v1692
      %v1725 = vunpack.c.l.b16 %v1693
      %v1726 = vunpack.c.l.b16 %v1694
      %v1727 = vunpack.c.l.b16 %v1695
      %v1728 = vpack.c.b16 %v1713, %v1712
      %v1729 = vpack.c.b16 %v1715, %v1714
      %v1730 = vpack.c.b16 %v1717, %v1716
      %v1731 = vpack.c.b16 %v1719, %v1718
      %v1732 = vpack.c.b16 %v1721, %v1720
      %v1733 = vpack.c.b16 %v1723, %v1722
      %v1734 = vpack.c.b16 %v1725, %v1724
      %v1735 = vpack.c.b16 %v1727, %v1726
      %1744 = vmatpush.bf16.msra.mxu0 %v1735
      %1745 = vmatpush.bf16.msra.mxu0 %v1734
      %1746 = vmatpush.bf16.msra.mxu0 %v1733
      %1747 = vmatpush.bf16.msra.mxu0 %v1732
      %1748 = vmatpush.bf16.msra.mxu0 %v1731
      %1749 = vmatpush.bf16.msra.mxu0 %v1730
      %1750 = vmatpush.bf16.msra.mxu0 %v1729
      %1751 = vmatpush.bf16.msra.mxu0 %v1728
      %1752 = vmatmul.bf16.gmra.mxu0 %v1674
      %v1753 = vpop.f32.mrf.mxu0
      %v1754 = vadd.f32 0.0, %v1753
      %v1755 = vpop.f32.mrf.mxu0
      %v1756 = vadd.f32 0.0, %v1755
      %1757 = vmatmul.bf16.gmra.mxu0 %v1675
      %v1758 = vpop.f32.mrf.mxu0
      %v1759 = vadd.f32 0.0, %v1758
      %v1760 = vpop.f32.mrf.mxu0
      %v1761 = vadd.f32 0.0, %v1760
      %1762 = vmatmul.bf16.gmra.mxu0 %v1676
      %v1763 = vpop.f32.mrf.mxu0
      %v1764 = vadd.f32 0.0, %v1763
      %v1765 = vpop.f32.mrf.mxu0
      %v1766 = vadd.f32 0.0, %v1765
      %1767 = vmatmul.bf16.gmra.mxu0 %v1677
      %v1768 = vpop.f32.mrf.mxu0
      %v1769 = vadd.f32 0.0, %v1768
      %v1770 = vpop.f32.mrf.mxu0
      %v1771 = vadd.f32 0.0, %v1770
      %1772 = vmatmul.bf16.gmra.mxu0 %v1678
      %v1773 = vpop.f32.mrf.mxu0
      %v1774 = vadd.f32 0.0, %v1773
      %v1775 = vpop.f32.mrf.mxu0
      %v1776 = vadd.f32 0.0, %v1775
      %1777 = vdwg.mxu0
      %v1778 = vadd.f32 %v1654, %v1754
      %v1779 = vadd.f32 %v1655, %v1756
      %v1780 = vadd.f32 %v1656, %v1759
      %v1781 = vadd.f32 %v1657, %v1761
      %v1782 = vadd.f32 %v1658, %v1764
      %v1783 = vadd.f32 %v1659, %v1766
      %v1784 = vadd.f32 %v1660, %v1769
      %v1785 = vadd.f32 %v1661, %v1771
      %v1786 = vadd.f32 %v1662, %v1774
      %v1787 = vadd.f32 %v1663, %v1776
      %v1788 = vld [vmem:[#allocation2 + $0xb] sm:$0xff]
      %v1789 = vld [vmem:[#allocation2 + $0x13] sm:$0xff]
      %v1790 = vld [vmem:[#allocation2 + $0x1b] sm:$0xff]
      %v1791 = vld [vmem:[#allocation2 + $0x23] sm:$0xff]
      %v1792 = vld [vmem:[#allocation2 + $0x2b] sm:$0xff]
      %v1793 = vld [vmem:[#allocation2 + $0x33] sm:$0xff]
      %v1794 = vld [vmem:[#allocation2 + $0x3b] sm:$0xff]
      %v1795 = vld [vmem:[#allocation2 + $0x43] sm:$0xff]
      %v1796 = vld [vmem:[#allocation2 + $0x4b] sm:$0xff]
      %v1797 = vld [vmem:[#allocation2 + $0x53] sm:$0xff]
      %v1798 = vpack.c.bf16 %v1789, %v1788
      %v1799 = vpack.c.bf16 %v1791, %v1790
      %v1800 = vpack.c.bf16 %v1793, %v1792
      %v1801 = vpack.c.bf16 %v1795, %v1794
      %v1802 = vpack.c.bf16 %v1797, %v1796
      %s1803 = scalar_lea.vmem %s3, 256
      %v1804 = vld [vmem:[%s1803] sm:$0xf]
      %v1805 = vld [vmem:[%s1803 + $0x4] sm:$0xf]
      %v1806 = vld [vmem:[%s1803 + $0x8] sm:$0xf]
      %v1807 = vld [vmem:[%s1803 + $0xc] sm:$0xf]
      %v1808 = vld [vmem:[%s1803 + $0x10] sm:$0xf]
      %v1809 = vld [vmem:[%s1803 + $0x14] sm:$0xf]
      %v1810 = vld [vmem:[%s1803 + $0x18] sm:$0xf]
      %v1811 = vld [vmem:[%s1803 + $0x1c] sm:$0xf]
      %v1812 = vld [vmem:[%s1803 + $0x20] sm:$0xf]
      %v1813 = vld [vmem:[%s1803 + $0x24] sm:$0xf]
      %v1814 = vld [vmem:[%s1803 + $0x28] sm:$0xf]
      %v1815 = vld [vmem:[%s1803 + $0x2c] sm:$0xf]
      %v1816 = vld [vmem:[%s1803 + $0x30] sm:$0xf]
      %v1817 = vld [vmem:[%s1803 + $0x34] sm:$0xf]
      %v1818 = vld [vmem:[%s1803 + $0x38] sm:$0xf]
      %v1819 = vld [vmem:[%s1803 + $0x3c] sm:$0xf]
      %v1836 = vunpack.c.l.b16 %v1804
      %v1837 = vunpack.c.l.b16 %v1805
      %v1838 = vunpack.c.l.b16 %v1806
      %v1839 = vunpack.c.l.b16 %v1807
      %v1840 = vunpack.c.l.b16 %v1808
      %v1841 = vunpack.c.l.b16 %v1809
      %v1842 = vunpack.c.l.b16 %v1810
      %v1843 = vunpack.c.l.b16 %v1811
      %v1844 = vunpack.c.l.b16 %v1812
      %v1845 = vunpack.c.l.b16 %v1813
      %v1846 = vunpack.c.l.b16 %v1814
      %v1847 = vunpack.c.l.b16 %v1815
      %v1848 = vunpack.c.l.b16 %v1816
      %v1849 = vunpack.c.l.b16 %v1817
      %v1850 = vunpack.c.l.b16 %v1818
      %v1851 = vunpack.c.l.b16 %v1819
      %v1852 = vpack.c.b16 %v1837, %v1836
      %v1853 = vpack.c.b16 %v1839, %v1838
      %v1854 = vpack.c.b16 %v1841, %v1840
      %v1855 = vpack.c.b16 %v1843, %v1842
      %v1856 = vpack.c.b16 %v1845, %v1844
      %v1857 = vpack.c.b16 %v1847, %v1846
      %v1858 = vpack.c.b16 %v1849, %v1848
      %v1859 = vpack.c.b16 %v1851, %v1850
      %1868 = vmatpush.bf16.msra.mxu0 %v1859
      %1869 = vmatpush.bf16.msra.mxu0 %v1858
      %1870 = vmatpush.bf16.msra.mxu0 %v1857
      %1871 = vmatpush.bf16.msra.mxu0 %v1856
      %1872 = vmatpush.bf16.msra.mxu0 %v1855
      %1873 = vmatpush.bf16.msra.mxu0 %v1854
      %1874 = vmatpush.bf16.msra.mxu0 %v1853
      %1875 = vmatpush.bf16.msra.mxu0 %v1852
      %1876 = vmatmul.bf16.gmra.mxu0 %v1798
      %v1877 = vpop.f32.mrf.mxu0
      %v1878 = vadd.f32 0.0, %v1877
      %v1879 = vpop.f32.mrf.mxu0
      %v1880 = vadd.f32 0.0, %v1879
      %1881 = vmatmul.bf16.gmra.mxu0 %v1799
      %v1882 = vpop.f32.mrf.mxu0
      %v1883 = vadd.f32 0.0, %v1882
      %v1884 = vpop.f32.mrf.mxu0
      %v1885 = vadd.f32 0.0, %v1884
      %1886 = vmatmul.bf16.gmra.mxu0 %v1800
      %v1887 = vpop.f32.mrf.mxu0
      %v1888 = vadd.f32 0.0, %v1887
      %v1889 = vpop.f32.mrf.mxu0
      %v1890 = vadd.f32 0.0, %v1889
      %1891 = vmatmul.bf16.gmra.mxu0 %v1801
      %v1892 = vpop.f32.mrf.mxu0
      %v1893 = vadd.f32 0.0, %v1892
      %v1894 = vpop.f32.mrf.mxu0
      %v1895 = vadd.f32 0.0, %v1894
      %1896 = vmatmul.bf16.gmra.mxu0 %v1802
      %v1897 = vpop.f32.mrf.mxu0
      %v1898 = vadd.f32 0.0, %v1897
      %v1899 = vpop.f32.mrf.mxu0
      %v1900 = vadd.f32 0.0, %v1899
      %1901 = vdwg.mxu0
      %v1902 = vadd.f32 %v1778, %v1878
      %v1903 = vadd.f32 %v1779, %v1880
      %v1904 = vadd.f32 %v1780, %v1883
      %v1905 = vadd.f32 %v1781, %v1885
      %v1906 = vadd.f32 %v1782, %v1888
      %v1907 = vadd.f32 %v1783, %v1890
      %v1908 = vadd.f32 %v1784, %v1893
      %v1909 = vadd.f32 %v1785, %v1895
      %v1910 = vadd.f32 %v1786, %v1898
      %v1911 = vadd.f32 %v1787, %v1900
      %v1912 = vld [vmem:[#allocation2 + $0xc] sm:$0xff]
      %v1913 = vld [vmem:[#allocation2 + $0x14] sm:$0xff]
      %v1914 = vld [vmem:[#allocation2 + $0x1c] sm:$0xff]
      %v1915 = vld [vmem:[#allocation2 + $0x24] sm:$0xff]
      %v1916 = vld [vmem:[#allocation2 + $0x2c] sm:$0xff]
      %v1917 = vld [vmem:[#allocation2 + $0x34] sm:$0xff]
      %v1918 = vld [vmem:[#allocation2 + $0x3c] sm:$0xff]
      %v1919 = vld [vmem:[#allocation2 + $0x44] sm:$0xff]
      %v1920 = vld [vmem:[#allocation2 + $0x4c] sm:$0xff]
      %v1921 = vld [vmem:[#allocation2 + $0x54] sm:$0xff]
      %v1922 = vpack.c.bf16 %v1913, %v1912
      %v1923 = vpack.c.bf16 %v1915, %v1914
      %v1924 = vpack.c.bf16 %v1917, %v1916
      %v1925 = vpack.c.bf16 %v1919, %v1918
      %v1926 = vpack.c.bf16 %v1921, %v1920
      %s1927 = scalar_lea.vmem %s3, 320
      %v1928 = vld [vmem:[%s1927] sm:$0xf]
      %v1929 = vld [vmem:[%s1927 + $0x4] sm:$0xf]
      %v1930 = vld [vmem:[%s1927 + $0x8] sm:$0xf]
      %v1931 = vld [vmem:[%s1927 + $0xc] sm:$0xf]
      %v1932 = vld [vmem:[%s1927 + $0x10] sm:$0xf]
      %v1933 = vld [vmem:[%s1927 + $0x14] sm:$0xf]
      %v1934 = vld [vmem:[%s1927 + $0x18] sm:$0xf]
      %v1935 = vld [vmem:[%s1927 + $0x1c] sm:$0xf]
      %v1936 = vld [vmem:[%s1927 + $0x20] sm:$0xf]
      %v1937 = vld [vmem:[%s1927 + $0x24] sm:$0xf]
      %v1938 = vld [vmem:[%s1927 + $0x28] sm:$0xf]
      %v1939 = vld [vmem:[%s1927 + $0x2c] sm:$0xf]
      %v1940 = vld [vmem:[%s1927 + $0x30] sm:$0xf]
      %v1941 = vld [vmem:[%s1927 + $0x34] sm:$0xf]
      %v1942 = vld [vmem:[%s1927 + $0x38] sm:$0xf]
      %v1943 = vld [vmem:[%s1927 + $0x3c] sm:$0xf]
      %v1960 = vunpack.c.l.b16 %v1928
      %v1961 = vunpack.c.l.b16 %v1929
      %v1962 = vunpack.c.l.b16 %v1930
      %v1963 = vunpack.c.l.b16 %v1931
      %v1964 = vunpack.c.l.b16 %v1932
      %v1965 = vunpack.c.l.b16 %v1933
      %v1966 = vunpack.c.l.b16 %v1934
      %v1967 = vunpack.c.l.b16 %v1935
      %v1968 = vunpack.c.l.b16 %v1936
      %v1969 = vunpack.c.l.b16 %v1937
      %v1970 = vunpack.c.l.b16 %v1938
      %v1971 = vunpack.c.l.b16 %v1939
      %v1972 = vunpack.c.l.b16 %v1940
      %v1973 = vunpack.c.l.b16 %v1941
      %v1974 = vunpack.c.l.b16 %v1942
      %v1975 = vunpack.c.l.b16 %v1943
      %v1976 = vpack.c.b16 %v1961, %v1960
      %v1977 = vpack.c.b16 %v1963, %v1962
      %v1978 = vpack.c.b16 %v1965, %v1964
      %v1979 = vpack.c.b16 %v1967, %v1966
      %v1980 = vpack.c.b16 %v1969, %v1968
      %v1981 = vpack.c.b16 %v1971, %v1970
      %v1982 = vpack.c.b16 %v1973, %v1972
      %v1983 = vpack.c.b16 %v1975, %v1974
      %1992 = vmatpush.bf16.msra.mxu0 %v1983
      %1993 = vmatpush.bf16.msra.mxu0 %v1982
      %1994 = vmatpush.bf16.msra.mxu0 %v1981
      %1995 = vmatpush.bf16.msra.mxu0 %v1980
      %1996 = vmatpush.bf16.msra.mxu0 %v1979
      %1997 = vmatpush.bf16.msra.mxu0 %v1978
      %1998 = vmatpush.bf16.msra.mxu0 %v1977
      %1999 = vmatpush.bf16.msra.mxu0 %v1976
      %2000 = vmatmul.bf16.gmra.mxu0 %v1922
      %v2001 = vpop.f32.mrf.mxu0
      %v2002 = vadd.f32 0.0, %v2001
      %v2003 = vpop.f32.mrf.mxu0
      %v2004 = vadd.f32 0.0, %v2003
      %2005 = vmatmul.bf16.gmra.mxu0 %v1923
      %v2006 = vpop.f32.mrf.mxu0
      %v2007 = vadd.f32 0.0, %v2006
      %v2008 = vpop.f32.mrf.mxu0
      %v2009 = vadd.f32 0.0, %v2008
      %2010 = vmatmul.bf16.gmra.mxu0 %v1924
      %v2011 = vpop.f32.mrf.mxu0
      %v2012 = vadd.f32 0.0, %v2011
      %v2013 = vpop.f32.mrf.mxu0
      %v2014 = vadd.f32 0.0, %v2013
      %2015 = vmatmul.bf16.gmra.mxu0 %v1925
      %v2016 = vpop.f32.mrf.mxu0
      %v2017 = vadd.f32 0.0, %v2016
      %v2018 = vpop.f32.mrf.mxu0
      %v2019 = vadd.f32 0.0, %v2018
      %2020 = vmatmul.bf16.gmra.mxu0 %v1926
      %v2021 = vpop.f32.mrf.mxu0
      %v2022 = vadd.f32 0.0, %v2021
      %v2023 = vpop.f32.mrf.mxu0
      %v2024 = vadd.f32 0.0, %v2023
      %2025 = vdwg.mxu0
      %v2026 = vadd.f32 %v1902, %v2002
      %v2027 = vadd.f32 %v1903, %v2004
      %v2028 = vadd.f32 %v1904, %v2007
      %v2029 = vadd.f32 %v1905, %v2009
      %v2030 = vadd.f32 %v1906, %v2012
      %v2031 = vadd.f32 %v1907, %v2014
      %v2032 = vadd.f32 %v1908, %v2017
      %v2033 = vadd.f32 %v1909, %v2019
      %v2034 = vadd.f32 %v1910, %v2022
      %v2035 = vadd.f32 %v1911, %v2024
      %v2036 = vld [vmem:[#allocation2 + $0x14] sm:$0xff]
      %v2037 = vld [vmem:[#allocation2 + $0x1c] sm:$0xff]
      %v2038 = vld [vmem:[#allocation2 + $0x24] sm:$0xff]
      %v2039 = vld [vmem:[#allocation2 + $0x2c] sm:$0xff]
      %v2040 = vld [vmem:[#allocation2 + $0x34] sm:$0xff]
      %v2041 = vld [vmem:[#allocation2 + $0x3c] sm:$0xff]
      %v2042 = vld [vmem:[#allocation2 + $0x44] sm:$0xff]
      %v2043 = vld [vmem:[#allocation2 + $0x4c] sm:$0xff]
      %v2044 = vld [vmem:[#allocation2 + $0x54] sm:$0xff]
      %v2045 = vld [vmem:[#allocation2 + $0x5c] sm:$0xff]
      %v2046 = vpack.c.bf16 %v2037, %v2036
      %v2047 = vpack.c.bf16 %v2039, %v2038
      %v2048 = vpack.c.bf16 %v2041, %v2040
      %v2049 = vpack.c.bf16 %v2043, %v2042
      %v2050 = vpack.c.bf16 %v2045, %v2044
      %s2051 = scalar_lea.vmem %s3, 384
      %v2052 = vld [vmem:[%s2051] sm:$0xf]
      %v2053 = vld [vmem:[%s2051 + $0x4] sm:$0xf]
      %v2054 = vld [vmem:[%s2051 + $0x8] sm:$0xf]
      %v2055 = vld [vmem:[%s2051 + $0xc] sm:$0xf]
      %v2056 = vld [vmem:[%s2051 + $0x10] sm:$0xf]
      %v2057 = vld [vmem:[%s2051 + $0x14] sm:$0xf]
      %v2058 = vld [vmem:[%s2051 + $0x18] sm:$0xf]
      %v2059 = vld [vmem:[%s2051 + $0x1c] sm:$0xf]
      %v2060 = vld [vmem:[%s2051 + $0x20] sm:$0xf]
      %v2061 = vld [vmem:[%s2051 + $0x24] sm:$0xf]
      %v2062 = vld [vmem:[%s2051 + $0x28] sm:$0xf]
      %v2063 = vld [vmem:[%s2051 + $0x2c] sm:$0xf]
      %v2064 = vld [vmem:[%s2051 + $0x30] sm:$0xf]
      %v2065 = vld [vmem:[%s2051 + $0x34] sm:$0xf]
      %v2066 = vld [vmem:[%s2051 + $0x38] sm:$0xf]
      %v2067 = vld [vmem:[%s2051 + $0x3c] sm:$0xf]
      %v2084 = vunpack.c.l.b16 %v2052
      %v2085 = vunpack.c.l.b16 %v2053
      %v2086 = vunpack.c.l.b16 %v2054
      %v2087 = vunpack.c.l.b16 %v2055
      %v2088 = vunpack.c.l.b16 %v2056
      %v2089 = vunpack.c.l.b16 %v2057
      %v2090 = vunpack.c.l.b16 %v2058
      %v2091 = vunpack.c.l.b16 %v2059
      %v2092 = vunpack.c.l.b16 %v2060
      %v2093 = vunpack.c.l.b16 %v2061
      %v2094 = vunpack.c.l.b16 %v2062
      %v2095 = vunpack.c.l.b16 %v2063
      %v2096 = vunpack.c.l.b16 %v2064
      %v2097 = vunpack.c.l.b16 %v2065
      %v2098 = vunpack.c.l.b16 %v2066
      %v2099 = vunpack.c.l.b16 %v2067
      %v2100 = vpack.c.b16 %v2085, %v2084
      %v2101 = vpack.c.b16 %v2087, %v2086
      %v2102 = vpack.c.b16 %v2089, %v2088
      %v2103 = vpack.c.b16 %v2091, %v2090
      %v2104 = vpack.c.b16 %v2093, %v2092
      %v2105 = vpack.c.b16 %v2095, %v2094
      %v2106 = vpack.c.b16 %v2097, %v2096
      %v2107 = vpack.c.b16 %v2099, %v2098
      %2116 = vmatpush.bf16.msra.mxu0 %v2107
      %2117 = vmatpush.bf16.msra.mxu0 %v2106
      %2118 = vmatpush.bf16.msra.mxu0 %v2105
      %2119 = vmatpush.bf16.msra.mxu0 %v2104
      %2120 = vmatpush.bf16.msra.mxu0 %v2103
      %2121 = vmatpush.bf16.msra.mxu0 %v2102
      %2122 = vmatpush.bf16.msra.mxu0 %v2101
      %2123 = vmatpush.bf16.msra.mxu0 %v2100
      %2124 = vmatmul.bf16.gmra.mxu0 %v2046
      %v2125 = vpop.f32.mrf.mxu0
      %v2126 = vadd.f32 0.0, %v2125
      %v2127 = vpop.f32.mrf.mxu0
      %v2128 = vadd.f32 0.0, %v2127
      %2129 = vmatmul.bf16.gmra.mxu0 %v2047
      %v2130 = vpop.f32.mrf.mxu0
      %v2131 = vadd.f32 0.0, %v2130
      %v2132 = vpop.f32.mrf.mxu0
      %v2133 = vadd.f32 0.0, %v2132
      %2134 = vmatmul.bf16.gmra.mxu0 %v2048
      %v2135 = vpop.f32.mrf.mxu0
      %v2136 = vadd.f32 0.0, %v2135
      %v2137 = vpop.f32.mrf.mxu0
      %v2138 = vadd.f32 0.0, %v2137
      %2139 = vmatmul.bf16.gmra.mxu0 %v2049
      %v2140 = vpop.f32.mrf.mxu0
      %v2141 = vadd.f32 0.0, %v2140
      %v2142 = vpop.f32.mrf.mxu0
      %v2143 = vadd.f32 0.0, %v2142
      %2144 = vmatmul.bf16.gmra.mxu0 %v2050
      %v2145 = vpop.f32.mrf.mxu0
      %v2146 = vadd.f32 0.0, %v2145
      %v2147 = vpop.f32.mrf.mxu0
      %v2148 = vadd.f32 0.0, %v2147
      %2149 = vdwg.mxu0
      %v2150 = vadd.f32 %v2026, %v2126
      %v2151 = vadd.f32 %v2027, %v2128
      %v2152 = vadd.f32 %v2028, %v2131
      %v2153 = vadd.f32 %v2029, %v2133
      %v2154 = vadd.f32 %v2030, %v2136
      %v2155 = vadd.f32 %v2031, %v2138
      %v2156 = vadd.f32 %v2032, %v2141
      %v2157 = vadd.f32 %v2033, %v2143
      %v2158 = vadd.f32 %v2034, %v2146
      %v2159 = vadd.f32 %v2035, %v2148
      %v2160 = vld [vmem:[#allocation2 + $0x15] sm:$0xff]
      %v2161 = vld [vmem:[#allocation2 + $0x1d] sm:$0xff]
      %v2162 = vld [vmem:[#allocation2 + $0x25] sm:$0xff]
      %v2163 = vld [vmem:[#allocation2 + $0x2d] sm:$0xff]
      %v2164 = vld [vmem:[#allocation2 + $0x35] sm:$0xff]
      %v2165 = vld [vmem:[#allocation2 + $0x3d] sm:$0xff]
      %v2166 = vld [vmem:[#allocation2 + $0x45] sm:$0xff]
      %v2167 = vld [vmem:[#allocation2 + $0x4d] sm:$0xff]
      %v2168 = vld [vmem:[#allocation2 + $0x55] sm:$0xff]
      %v2169 = vld [vmem:[#allocation2 + $0x5d] sm:$0xff]
      %v2170 = vpack.c.bf16 %v2161, %v2160
      %v2171 = vpack.c.bf16 %v2163, %v2162
      %v2172 = vpack.c.bf16 %v2165, %v2164
      %v2173 = vpack.c.bf16 %v2167, %v2166
      %v2174 = vpack.c.bf16 %v2169, %v2168
      %s2175 = scalar_lea.vmem %s3, 448
      %v2176 = vld [vmem:[%s2175] sm:$0xf]
      %v2177 = vld [vmem:[%s2175 + $0x4] sm:$0xf]
      %v2178 = vld [vmem:[%s2175 + $0x8] sm:$0xf]
      %v2179 = vld [vmem:[%s2175 + $0xc] sm:$0xf]
      %v2180 = vld [vmem:[%s2175 + $0x10] sm:$0xf]
      %v2181 = vld [vmem:[%s2175 + $0x14] sm:$0xf]
      %v2182 = vld [vmem:[%s2175 + $0x18] sm:$0xf]
      %v2183 = vld [vmem:[%s2175 + $0x1c] sm:$0xf]
      %v2184 = vld [vmem:[%s2175 + $0x20] sm:$0xf]
      %v2185 = vld [vmem:[%s2175 + $0x24] sm:$0xf]
      %v2186 = vld [vmem:[%s2175 + $0x28] sm:$0xf]
      %v2187 = vld [vmem:[%s2175 + $0x2c] sm:$0xf]
      %v2188 = vld [vmem:[%s2175 + $0x30] sm:$0xf]
      %v2189 = vld [vmem:[%s2175 + $0x34] sm:$0xf]
      %v2190 = vld [vmem:[%s2175 + $0x38] sm:$0xf]
      %v2191 = vld [vmem:[%s2175 + $0x3c] sm:$0xf]
      %v2208 = vunpack.c.l.b16 %v2176
      %v2209 = vunpack.c.l.b16 %v2177
      %v2210 = vunpack.c.l.b16 %v2178
      %v2211 = vunpack.c.l.b16 %v2179
      %v2212 = vunpack.c.l.b16 %v2180
      %v2213 = vunpack.c.l.b16 %v2181
      %v2214 = vunpack.c.l.b16 %v2182
      %v2215 = vunpack.c.l.b16 %v2183
      %v2216 = vunpack.c.l.b16 %v2184
      %v2217 = vunpack.c.l.b16 %v2185
      %v2218 = vunpack.c.l.b16 %v2186
      %v2219 = vunpack.c.l.b16 %v2187
      %v2220 = vunpack.c.l.b16 %v2188
      %v2221 = vunpack.c.l.b16 %v2189
      %v2222 = vunpack.c.l.b16 %v2190
      %v2223 = vunpack.c.l.b16 %v2191
      %v2224 = vpack.c.b16 %v2209, %v2208
      %v2225 = vpack.c.b16 %v2211, %v2210
      %v2226 = vpack.c.b16 %v2213, %v2212
      %v2227 = vpack.c.b16 %v2215, %v2214
      %v2228 = vpack.c.b16 %v2217, %v2216
      %v2229 = vpack.c.b16 %v2219, %v2218
      %v2230 = vpack.c.b16 %v2221, %v2220
      %v2231 = vpack.c.b16 %v2223, %v2222
      %2240 = vmatpush.bf16.msra.mxu0 %v2231
      %2241 = vmatpush.bf16.msra.mxu0 %v2230
      %2242 = vmatpush.bf16.msra.mxu0 %v2229
      %2243 = vmatpush.bf16.msra.mxu0 %v2228
      %2244 = vmatpush.bf16.msra.mxu0 %v2227
      %2245 = vmatpush.bf16.msra.mxu0 %v2226
      %2246 = vmatpush.bf16.msra.mxu0 %v2225
      %2247 = vmatpush.bf16.msra.mxu0 %v2224
      %2248 = vmatmul.bf16.gmra.mxu0 %v2170
      %v2249 = vpop.f32.mrf.mxu0
      %v2250 = vadd.f32 0.0, %v2249
      %v2251 = vpop.f32.mrf.mxu0
      %v2252 = vadd.f32 0.0, %v2251
      %2253 = vmatmul.bf16.gmra.mxu0 %v2171
      %v2254 = vpop.f32.mrf.mxu0
      %v2255 = vadd.f32 0.0, %v2254
      %v2256 = vpop.f32.mrf.mxu0
      %v2257 = vadd.f32 0.0, %v2256
      %2258 = vmatmul.bf16.gmra.mxu0 %v2172
      %v2259 = vpop.f32.mrf.mxu0
      %v2260 = vadd.f32 0.0, %v2259
      %v2261 = vpop.f32.mrf.mxu0
      %v2262 = vadd.f32 0.0, %v2261
      %2263 = vmatmul.bf16.gmra.mxu0 %v2173
      %v2264 = vpop.f32.mrf.mxu0
      %v2265 = vadd.f32 0.0, %v2264
      %v2266 = vpop.f32.mrf.mxu0
      %v2267 = vadd.f32 0.0, %v2266
      %2268 = vmatmul.bf16.gmra.mxu0 %v2174
      %v2269 = vpop.f32.mrf.mxu0
      %v2270 = vadd.f32 0.0, %v2269
      %v2271 = vpop.f32.mrf.mxu0
      %v2272 = vadd.f32 0.0, %v2271
      %2273 = vdwg.mxu0
      %v2274 = vadd.f32 %v2150, %v2250
      %v2275 = vadd.f32 %v2151, %v2252
      %v2276 = vadd.f32 %v2152, %v2255
      %v2277 = vadd.f32 %v2153, %v2257
      %v2278 = vadd.f32 %v2154, %v2260
      %v2279 = vadd.f32 %v2155, %v2262
      %v2280 = vadd.f32 %v2156, %v2265
      %v2281 = vadd.f32 %v2157, %v2267
      %v2282 = vadd.f32 %v2158, %v2270
      %v2283 = vadd.f32 %v2159, %v2272
      %v2284 = vld [vmem:[#allocation2 + $0x16] sm:$0xff]
      %v2285 = vld [vmem:[#allocation2 + $0x1e] sm:$0xff]
      %v2286 = vld [vmem:[#allocation2 + $0x26] sm:$0xff]
      %v2287 = vld [vmem:[#allocation2 + $0x2e] sm:$0xff]
      %v2288 = vld [vmem:[#allocation2 + $0x36] sm:$0xff]
      %v2289 = vld [vmem:[#allocation2 + $0x3e] sm:$0xff]
      %v2290 = vld [vmem:[#allocation2 + $0x46] sm:$0xff]
      %v2291 = vld [vmem:[#allocation2 + $0x4e] sm:$0xff]
      %v2292 = vld [vmem:[#allocation2 + $0x56] sm:$0xff]
      %v2293 = vld [vmem:[#allocation2 + $0x5e] sm:$0xff]
      %v2294 = vpack.c.bf16 %v2285, %v2284
      %v2295 = vpack.c.bf16 %v2287, %v2286
      %v2296 = vpack.c.bf16 %v2289, %v2288
      %v2297 = vpack.c.bf16 %v2291, %v2290
      %v2298 = vpack.c.bf16 %v2293, %v2292
      %s2299 = scalar_lea.vmem %s3, 512
      %v2300 = vld [vmem:[%s2299] sm:$0xf]
      %v2301 = vld [vmem:[%s2299 + $0x4] sm:$0xf]
      %v2302 = vld [vmem:[%s2299 + $0x8] sm:$0xf]
      %v2303 = vld [vmem:[%s2299 + $0xc] sm:$0xf]
      %v2304 = vld [vmem:[%s2299 + $0x10] sm:$0xf]
      %v2305 = vld [vmem:[%s2299 + $0x14] sm:$0xf]
      %v2306 = vld [vmem:[%s2299 + $0x18] sm:$0xf]
      %v2307 = vld [vmem:[%s2299 + $0x1c] sm:$0xf]
      %v2308 = vld [vmem:[%s2299 + $0x20] sm:$0xf]
      %v2309 = vld [vmem:[%s2299 + $0x24] sm:$0xf]
      %v2310 = vld [vmem:[%s2299 + $0x28] sm:$0xf]
      %v2311 = vld [vmem:[%s2299 + $0x2c] sm:$0xf]
      %v2312 = vld [vmem:[%s2299 + $0x30] sm:$0xf]
      %v2313 = vld [vmem:[%s2299 + $0x34] sm:$0xf]
      %v2314 = vld [vmem:[%s2299 + $0x38] sm:$0xf]
      %v2315 = vld [vmem:[%s2299 + $0x3c] sm:$0xf]
      %v2332 = vunpack.c.l.b16 %v2300
      %v2333 = vunpack.c.l.b16 %v2301
      %v2334 = vunpack.c.l.b16 %v2302
      %v2335 = vunpack.c.l.b16 %v2303
      %v2336 = vunpack.c.l.b16 %v2304
      %v2337 = vunpack.c.l.b16 %v2305
      %v2338 = vunpack.c.l.b16 %v2306
      %v2339 = vunpack.c.l.b16 %v2307
      %v2340 = vunpack.c.l.b16 %v2308
      %v2341 = vunpack.c.l.b16 %v2309
      %v2342 = vunpack.c.l.b16 %v2310
      %v2343 = vunpack.c.l.b16 %v2311
      %v2344 = vunpack.c.l.b16 %v2312
      %v2345 = vunpack.c.l.b16 %v2313
      %v2346 = vunpack.c.l.b16 %v2314
      %v2347 = vunpack.c.l.b16 %v2315
      %v2348 = vpack.c.b16 %v2333, %v2332
      %v2349 = vpack.c.b16 %v2335, %v2334
      %v2350 = vpack.c.b16 %v2337, %v2336
      %v2351 = vpack.c.b16 %v2339, %v2338
      %v2352 = vpack.c.b16 %v2341, %v2340
      %v2353 = vpack.c.b16 %v2343, %v2342
      %v2354 = vpack.c.b16 %v2345, %v2344
      %v2355 = vpack.c.b16 %v2347, %v2346
      %2364 = vmatpush.bf16.msra.mxu0 %v2355
      %2365 = vmatpush.bf16.msra.mxu0 %v2354
      %2366 = vmatpush.bf16.msra.mxu0 %v2353
      %2367 = vmatpush.bf16.msra.mxu0 %v2352
      %2368 = vmatpush.bf16.msra.mxu0 %v2351
      %2369 = vmatpush.bf16.msra.mxu0 %v2350
      %2370 = vmatpush.bf16.msra.mxu0 %v2349
      %2371 = vmatpush.bf16.msra.mxu0 %v2348
      %2372 = vmatmul.bf16.gmra.mxu0 %v2294
      %v2373 = vpop.f32.mrf.mxu0
      %v2374 = vadd.f32 0.0, %v2373
      %v2375 = vpop.f32.mrf.mxu0
      %v2376 = vadd.f32 0.0, %v2375
      %2377 = vmatmul.bf16.gmra.mxu0 %v2295
      %v2378 = vpop.f32.mrf.mxu0
      %v2379 = vadd.f32 0.0, %v2378
      %v2380 = vpop.f32.mrf.mxu0
      %v2381 = vadd.f32 0.0, %v2380
      %2382 = vmatmul.bf16.gmra.mxu0 %v2296
      %v2383 = vpop.f32.mrf.mxu0
      %v2384 = vadd.f32 0.0, %v2383
      %v2385 = vpop.f32.mrf.mxu0
      %v2386 = vadd.f32 0.0, %v2385
      %2387 = vmatmul.bf16.gmra.mxu0 %v2297
      %v2388 = vpop.f32.mrf.mxu0
      %v2389 = vadd.f32 0.0, %v2388
      %v2390 = vpop.f32.mrf.mxu0
      %v2391 = vadd.f32 0.0, %v2390
      %2392 = vmatmul.bf16.gmra.mxu0 %v2298
      %v2393 = vpop.f32.mrf.mxu0
      %v2394 = vadd.f32 0.0, %v2393
      %v2395 = vpop.f32.mrf.mxu0
      %v2396 = vadd.f32 0.0, %v2395
      %2397 = vdwg.mxu0
      %v2398 = vadd.f32 %v2274, %v2374
      %v2399 = vadd.f32 %v2275, %v2376
      %v2400 = vadd.f32 %v2276, %v2379
      %v2401 = vadd.f32 %v2277, %v2381
      %v2402 = vadd.f32 %v2278, %v2384
      %v2403 = vadd.f32 %v2279, %v2386
      %v2404 = vadd.f32 %v2280, %v2389
      %v2405 = vadd.f32 %v2281, %v2391
      %v2406 = vadd.f32 %v2282, %v2394
      %v2407 = vadd.f32 %v2283, %v2396
      %v2408 = vld [vmem:[%s4] sm:$0x1]
      %v2410 = vperm.slane %v2408, 0
      %v2412 = vadd.f32 %v2398, %v2410
      %v2413 = vadd.f32 %v2399, %v2410
      %v2414 = vadd.f32 %v2400, %v2410
      %v2415 = vadd.f32 %v2401, %v2410
      %v2416 = vadd.f32 %v2402, %v2410
      %v2417 = vadd.f32 %v2403, %v2410
      %v2418 = vadd.f32 %v2404, %v2410
      %v2419 = vadd.f32 %v2405, %v2410
      %v2420 = vadd.f32 %v2406, %v2410
      %v2421 = vadd.f32 %v2407, %v2410
      %v2422 = vmax.f32 %v2412, 0.0
      %v2423 = vmax.f32 %v2413, 0.0
      %v2424 = vmax.f32 %v2414, 0.0
      %v2425 = vmax.f32 %v2415, 0.0
      %v2426 = vmax.f32 %v2416, 0.0
      %v2427 = vmax.f32 %v2417, 0.0
      %v2428 = vmax.f32 %v2418, 0.0
      %v2429 = vmax.f32 %v2419, 0.0
      %v2430 = vmax.f32 %v2420, 0.0
      %v2431 = vmax.f32 %v2421, 0.0
      %2432 = vst [vmem:[%s251] sm:$0xff] %v2422
      %2433 = vst [vmem:[%s251 + $0x8] sm:$0xff] %v2423
      %2434 = vst [vmem:[%s251 + $0x10] sm:$0xff] %v2424
      %2435 = vst [vmem:[%s251 + $0x18] sm:$0xff] %v2425
      %2436 = vst [vmem:[%s251 + $0x20] sm:$0xff] %v2426
      %2437 = vst [vmem:[%s251 + $0x28] sm:$0xff] %v2427
      %2438 = vst [vmem:[%s251 + $0x30] sm:$0xff] %v2428
      %2439 = vst [vmem:[%s251 + $0x38] sm:$0xff] %v2429
      %2440 = vst [vmem:[%s251 + $0x40] sm:$0xff] %v2430
      %2441 = vst [vmem:[%s251 + $0x48] sm:$0xff] %v2431
      %p2442 = scmp.lt.s32.totalorder %s17, 1
      %s2443 = scalar_select %p2442, %s17, 1
      %s2444 = smul.addr %s2443, 10
      %s2445 = smul.addr %s2444, 8
      %s2446 = scalar_lea.vmem %s6, %s2445
      // Predicated region
      $region45: #{a_call__.1} parent=43 // pred_check
        %p2447 = pneg %p166
      $region46: #{a_call__.1} parent=43 // pred_check_branch
        %2449 = sbr.rel (%p2447) target = $region48
      $region47: #{a_call__.1} parent=43 // pred_region
        _
      $region48: #{a_call__.1} parent=43 // pred_fallthru
        _
    $region44: #{a_call__.1} parent=5 // pred_fallthru
      _
    %p2450 = scmp.le.s32.totalorder 2, %s12
    // Predicated region
    $region49: #{a_call__.1} parent=5 // pred_check
      %p2451 = pneg %p2450
    $region50: #{a_call__.1} parent=5 // pred_check_branch
      %2453 = sbr.rel (%p2451) target = $region52
    $region51: #{a_call__.1} parent=5 // pred_region
      %s2454 = ssub.s32 %s12, 2
      // Predicated region
      $region53: #{a_call__.1} parent=51 // pred_check
        %p2455 = pneg %p172
      $region54: #{a_call__.1} parent=51 // pred_check_branch
        %2457 = sbr.rel (%p2455) target = $region56
      $region55: #{a_call__.1} parent=51 // pred_region
        %p2458 = scmp.lt.s32.totalorder %s18, 1
        %s2459 = scalar_select %p2458, %s18, 1
        %s2460 = smul.addr %s2459, 10
        %s2461 = smul.addr %s2460, 8
        %s2462 = scalar_lea.vmem %s6, %s2461
      $region56: #{a_call__.1} parent=51 // pred_fallthru
        _
    $region52: #{a_call__.1} parent=5 // pred_fallthru
      _
  $region6: #{a_call__.1} parent=0 // loop_footer
    %s16 = sadd.s32 1, %s12
  $region7: #{a_call__.1} parent=0 // loop_footer_branch
    %11 = sbr.rel target = $region3
  $region8: #{a_call__.1} parent=0 // loop_exit
    _

</llo_original>
